<compile_context>
chip_gen: v6e
topology: v6e:2x2x1
jax: 0.10.0
libtpu: 0.0.40
codegen_flags: <defaults>
</compile_context>

<pallas_src>
import jax
import jax.numpy as jnp
from jax import lax
from jax.experimental import pallas as pl
from jax.experimental.pallas import tpu as pltpu


def _pack_weight_table(w, W):
    """OIHW (Cout, Cin, 3, 3) conv weight -> (Cin*9, Cout*W) per-lane table.

    table[ci*9 + kh*3 + kw, co*W + w] = weight[co, ci, kh, kw] * dx_mask,
    where dx_mask zeroes lanes whose source column w + (kw-1) is out of range
    (i.e. the 'same' padding border along the width axis is folded into the
    weights so it costs nothing in the hot loop).
    """
    Cout, Cin, KH, KW = w.shape
    assert (KH, KW) == (3, 3), w.shape
    wt = jnp.transpose(w.astype(jnp.float32), (1, 2, 3, 0)).reshape(Cin, 9, Cout)
    tab = jnp.broadcast_to(wt[:, :, :, None], (Cin, 9, Cout, W))
    tab = tab.reshape(Cin, 9, Cout * W)
    wpos = jnp.arange(W)
    dx_of_t = (jnp.arange(9) % 3) - 1                      # tap t = kh*3 + kw
    src = wpos[None, :] + dx_of_t[:, None]                 # (9, W)
    valid = ((src >= 0) & (src < W)).astype(jnp.float32)   # (9, W)
    mask = jnp.tile(valid, (1, Cout))                      # (9, Cout*W)
    return (tab * mask[None, :, :]).reshape(Cin * 9, Cout * W)


def _make_kernel(Cin, Cmid, Cout, H, W):
    """conv3x3 -> ReLU -> conv3x3 for one batch item, lane-packed layout."""
    L0 = Cmid * W
    L1 = Cout * W

    def conv3x3(get_img, n_in, w_ref, lanes, mask_top, mask_bot):
        acc = jnp.zeros((H, lanes), jnp.float32)
        for ci in range(n_in):
            timg = get_img(ci)                                     # (H, lanes)
            # dy = -1 / +1 row variants: sublane roll + zero the wrapped row.
            r_m1 = pltpu.roll(timg, shift=1, axis=0) * mask_top
            r_p1 = pltpu.roll(timg, shift=H - 1, axis=0) * mask_bot
            rowvar = (r_m1, timg, r_p1)                            # kh = 0,1,2
            for kh in range(3):
                base = rowvar[kh]
                for kw in range(3):
                    dx = kw - 1
                    # Global lane roll; cross-segment wrap is zeroed by the
                    # dx mask folded into the weight table.
                    tap = base if dx == 0 else pltpu.roll(
                        base, shift=(-dx) % lanes, axis=1)
                    acc = acc + w_ref[ci * 9 + kh * 3 + kw, :] * tap
        return acc

    def kernel(x_ref, w0_ref, w1_ref, o_ref):
        # x_ref : (Cin, H, W)        this batch item (batch dim squeezed)
        # w0_ref: (Cin*9,  Cmid*W)   lane-packed conv0 weights (dx mask folded)
        # w1_ref: (Cmid*9, Cout*W)   lane-packed conv1 weights (dx mask folded)
        # o_ref : (H, Cout*W)        lane-dense output slab
        rows = lax.broadcasted_iota(jnp.int32, (H, 1), 0)
        mask_top = (rows > 0).astype(jnp.float32)       # zero row 0   (dy=-1)
        mask_bot = (rows < H - 1).astype(jnp.float32)   # zero row H-1 (dy=+1)

        def in0(ci):
            img = x_ref[ci].astype(jnp.float32)                     # (H, W)
            return jnp.concatenate([img] * Cmid, axis=1)            # (H, L0)

        hid = jnp.maximum(
            conv3x3(in0, Cin, w0_ref, L0, mask_top, mask_bot), 0.0)  # ReLU

        def in1(ci):
            img = hid[:, ci * W:(ci + 1) * W]                        # (H, W)
            return jnp.concatenate([img] * Cout, axis=1)             # (H, L1)

        acc1 = conv3x3(in1, Cmid, w1_ref, L1, mask_top, mask_bot)
        o_ref[...] = acc1.astype(o_ref.dtype)

    return kernel


def tuning_block(x, w0, w1):
    """TuningBlock forward.

    x : (B, Cin, H, W)      NCHW, as in PyTorch.
    w0: (Cmid, Cin, 3, 3)   conv0 weight, PyTorch OIHW layout (Cmid == Cin).
    w1: (Cout, Cmid, 3, 3)  conv1 weight, PyTorch OIHW layout.
    returns (B, Cout, H, W)
    """
    B, Cin, H, W = x.shape
    Cmid = w0.shape[0]
    Cout = w1.shape[0]
    assert w0.shape == (Cmid, Cin, 3, 3), w0.shape
    assert w1.shape == (Cout, Cmid, 3, 3), w1.shape

    # Tiny per-lane weight tables (hoistable to parameter-preparation time).
    w0_tab = _pack_weight_table(w0, W)   # (Cin*9,  Cmid*W)
    w1_tab = _pack_weight_table(w1, W)   # (Cmid*9, Cout*W)

    kernel = _make_kernel(Cin, Cmid, Cout, H, W)
    out_slab = pl.pallas_call(
        kernel,
        out_shape=jax.ShapeDtypeStruct((B, H, Cout * W), x.dtype),
        grid=(B,),
        in_specs=[
            pl.BlockSpec((pl.Squeezed(), Cin, H, W), lambda b: (b, 0, 0, 0)),
            pl.BlockSpec((Cin * 9, Cmid * W), lambda b: (0, 0)),
            pl.BlockSpec((Cmid * 9, Cout * W), lambda b: (0, 0)),
        ],
        out_specs=pl.BlockSpec((pl.Squeezed(), H, Cout * W),
                               lambda b: (b, 0, 0)),
        compiler_params=pltpu.CompilerParams(
            dimension_semantics=("parallel",)),
    )(x, w0_tab, w1_tab)

    # slab[b, h, co*W + w] -> NCHW (wrapper-side layout plumbing).
    return out_slab.reshape(B, H, Cout, W).transpose(0, 2, 1, 3)


def _conv_weight(key, cout, cin, k=3, init_scale=0.1):
    # nn.init.kaiming_normal_(w, a=0, mode='fan_in'): std = sqrt(2/(cin*k*k)),
    # then the module scales by init_scale (0.1).  Bias is disabled.
    fan_in = cin * k * k
    std = (2.0 / fan_in) ** 0.5
    w = jax.random.normal(key, (cout, cin, k, k), dtype=jnp.float32) * std
    return w * init_scale


def reference(x, w0, w1):
    # Pure-JAX reference matching PyTorch Conv2d (cross-correlation, pad=1).
    h = lax.conv_general_dilated(
        x, w0, window_strides=(1, 1), padding="SAME",
        dimension_numbers=("NCHW", "OIHW", "NCHW"))
    h = jnp.maximum(h, 0.0)
    return lax.conv_general_dilated(
        h, w1, window_strides=(1, 1), padding="SAME",
        dimension_numbers=("NCHW", "OIHW", "NCHW"))


if __name__ == "__main__":
    batch, channels, spatial = 2, 4, 16   # input_size = 4
    nch_out = 8

    key = jax.random.PRNGKey(0)
    kx, k0, k1 = jax.random.split(key, 3)

    x = jax.random.normal(kx, (batch, channels, spatial, spatial),
                          dtype=jnp.float32)
    w0 = _conv_weight(k0, channels, channels)   # conv0: C -> C
    w1 = _conv_weight(k1, nch_out, channels)    # conv1: C -> nch_out

    out = tuning_block(x, w0, w1)
    out = jax.block_until_ready(out)

    ref = reference(x, w0, w1)
    assert out.shape == (batch, nch_out, spatial, spatial), out.shape
    err = float(jnp.max(jnp.abs(out - ref)))
    assert err < 1e-4, err

    print("KERNEL_OK")
</pallas_src>

<mosaic_0001>
module attributes {stable_mosaic.version = 11 : i64} {
  func.func @kernel(%arg0: i32, %arg1: memref<1x4x16x16xf32, #tpu.memory_space<vmem>>, %arg2: memref<36x64xf32, #tpu.memory_space<vmem>>, %arg3: memref<36x128xf32, #tpu.memory_space<vmem>>, %arg4: memref<1x16x128xf32, #tpu.memory_space<vmem>>) attributes {dimension_semantics = [#tpu.dimension_semantics<parallel>], iteration_bounds = array<i64: 2>, scalar_prefetch = 0 : i64, scratch_operands = 0 : i64, tpu.core_type = #tpu.core_type<tc>, window_params = [{transform_indices = @transform_0, window_bounds = array<i64: 1, 4, 16, 16>}, {pipeline_mode = #tpu.pipeline_mode<synchronous>, transform_indices = @transform_1, window_bounds = array<i64: 36, 64>}, {pipeline_mode = #tpu.pipeline_mode<synchronous>, transform_indices = @transform_2, window_bounds = array<i64: 36, 128>}, {transform_indices = @transform_3, window_bounds = array<i64: 1, 16, 128>}]} {
    %0 = tpu.iota {dimensions = array<i32: 0>} : vector<16x1xi32>
    %c0_i32 = arith.constant 0 : i32
    %1 = vector.broadcast %c0_i32 : i32 to vector<16x1xi32>
    %2 = arith.cmpi sgt, %0, %1 : vector<16x1xi32>
    %3 = arith.extui %2 : vector<16x1xi1> to vector<16x1xi32>
    %4 = arith.sitofp %3 : vector<16x1xi32> to vector<16x1xf32>
    %c15_i32 = arith.constant 15 : i32
    %5 = vector.broadcast %c15_i32 : i32 to vector<16x1xi32>
    %6 = arith.cmpi slt, %0, %5 : vector<16x1xi32>
    %7 = arith.extui %6 : vector<16x1xi1> to vector<16x1xi32>
    %8 = arith.sitofp %7 : vector<16x1xi32> to vector<16x1xf32>
    %cst = arith.constant 0.000000e+00 : f32
    %9 = vector.broadcast %cst : f32 to vector<16x64xf32>
    %c0 = arith.constant 0 : index
    %c0_0 = arith.constant 0 : index
    %c0_1 = arith.constant 0 : index
    %c0_2 = arith.constant 0 : index
    %10 = vector.load %arg1[%c0, %c0_0, %c0_1, %c0_2] : memref<1x4x16x16xf32, #tpu.memory_space<vmem>>, vector<1x1x16x16xf32>
    %11 = vector.shape_cast %10 : vector<1x1x16x16xf32> to vector<16x16xf32>
    %12 = tpu.concatenate %11, %11, %11, %11 in 1 : vector<16x16xf32>, vector<16x16xf32>, vector<16x16xf32>, vector<16x16xf32> -> vector<16x64xf32>
    %c1_i32 = arith.constant 1 : i32
    %13 = tpu.dynamic_rotate %12 by %c1_i32 dim 0 : vector<16x64xf32>, i32 -> vector<16x64xf32>
    %14 = vector.broadcast %4 : vector<16x1xf32> to vector<16x64xf32>
    %15 = arith.mulf %13, %14 : vector<16x64xf32>
    %c15_i32_3 = arith.constant 15 : i32
    %16 = tpu.dynamic_rotate %12 by %c15_i32_3 dim 0 : vector<16x64xf32>, i32 -> vector<16x64xf32>
    %17 = vector.broadcast %8 : vector<16x1xf32> to vector<16x64xf32>
    %18 = arith.mulf %16, %17 : vector<16x64xf32>
    %c1_i32_4 = arith.constant 1 : i32
    %19 = tpu.dynamic_rotate %15 by %c1_i32_4 dim 1 : vector<16x64xf32>, i32 -> vector<16x64xf32>
    %c0_5 = arith.constant 0 : index
    %c0_6 = arith.constant 0 : index
    %20 = vector.load %arg2[%c0_5, %c0_6] : memref<36x64xf32, #tpu.memory_space<vmem>>, vector<1x64xf32>
    %21 = vector.shape_cast %20 : vector<1x64xf32> to vector<64xf32>
    %22 = vector.shape_cast %21 : vector<64xf32> to vector<1x64xf32>
    %23 = vector.broadcast %22 : vector<1x64xf32> to vector<16x64xf32>
    %24 = arith.mulf %23, %19 : vector<16x64xf32>
    %25 = arith.addf %9, %24 : vector<16x64xf32>
    %c1 = arith.constant 1 : index
    %c0_7 = arith.constant 0 : index
    %26 = vector.load %arg2[%c1, %c0_7] : memref<36x64xf32, #tpu.memory_space<vmem>>, vector<1x64xf32>
    %27 = vector.shape_cast %26 : vector<1x64xf32> to vector<64xf32>
    %28 = vector.shape_cast %27 : vector<64xf32> to vector<1x64xf32>
    %29 = vector.broadcast %28 : vector<1x64xf32> to vector<16x64xf32>
    %30 = arith.mulf %29, %15 : vector<16x64xf32>
    %31 = arith.addf %25, %30 : vector<16x64xf32>
    %c63_i32 = arith.constant 63 : i32
    %32 = tpu.dynamic_rotate %15 by %c63_i32 dim 1 : vector<16x64xf32>, i32 -> vector<16x64xf32>
    %c2 = arith.constant 2 : index
    %c0_8 = arith.constant 0 : index
    %33 = vector.load %arg2[%c2, %c0_8] : memref<36x64xf32, #tpu.memory_space<vmem>>, vector<1x64xf32>
    %34 = vector.shape_cast %33 : vector<1x64xf32> to vector<64xf32>
    %35 = vector.shape_cast %34 : vector<64xf32> to vector<1x64xf32>
    %36 = vector.broadcast %35 : vector<1x64xf32> to vector<16x64xf32>
    %37 = arith.mulf %36, %32 : vector<16x64xf32>
    %38 = arith.addf %31, %37 : vector<16x64xf32>
    %c1_i32_9 = arith.constant 1 : i32
    %39 = tpu.dynamic_rotate %12 by %c1_i32_9 dim 1 : vector<16x64xf32>, i32 -> vector<16x64xf32>
    %c3 = arith.constant 3 : index
    %c0_10 = arith.constant 0 : index
    %40 = vector.load %arg2[%c3, %c0_10] : memref<36x64xf32, #tpu.memory_space<vmem>>, vector<1x64xf32>
    %41 = vector.shape_cast %40 : vector<1x64xf32> to vector<64xf32>
    %42 = vector.shape_cast %41 : vector<64xf32> to vector<1x64xf32>
    %43 = vector.broadcast %42 : vector<1x64xf32> to vector<16x64xf32>
    %44 = arith.mulf %43, %39 : vector<16x64xf32>
    %45 = arith.addf %38, %44 : vector<16x64xf32>
    %c4 = arith.constant 4 : index
    %c0_11 = arith.constant 0 : index
    %46 = vector.load %arg2[%c4, %c0_11] : memref<36x64xf32, #tpu.memory_space<vmem>>, vector<1x64xf32>
    %47 = vector.shape_cast %46 : vector<1x64xf32> to vector<64xf32>
    %48 = vector.shape_cast %47 : vector<64xf32> to vector<1x64xf32>
    %49 = vector.broadcast %48 : vector<1x64xf32> to vector<16x64xf32>
    %50 = arith.mulf %49, %12 : vector<16x64xf32>
    %51 = arith.addf %45, %50 : vector<16x64xf32>
    %c63_i32_12 = arith.constant 63 : i32
    %52 = tpu.dynamic_rotate %12 by %c63_i32_12 dim 1 : vector<16x64xf32>, i32 -> vector<16x64xf32>
    %c5 = arith.constant 5 : index
    %c0_13 = arith.constant 0 : index
    %53 = vector.load %arg2[%c5, %c0_13] : memref<36x64xf32, #tpu.memory_space<vmem>>, vector<1x64xf32>
    %54 = vector.shape_cast %53 : vector<1x64xf32> to vector<64xf32>
    %55 = vector.shape_cast %54 : vector<64xf32> to vector<1x64xf32>
    %56 = vector.broadcast %55 : vector<1x64xf32> to vector<16x64xf32>
    %57 = arith.mulf %56, %52 : vector<16x64xf32>
    %58 = arith.addf %51, %57 : vector<16x64xf32>
    %c1_i32_14 = arith.constant 1 : i32
    %59 = tpu.dynamic_rotate %18 by %c1_i32_14 dim 1 : vector<16x64xf32>, i32 -> vector<16x64xf32>
    %c6 = arith.constant 6 : index
    %c0_15 = arith.constant 0 : index
    %60 = vector.load %arg2[%c6, %c0_15] : memref<36x64xf32, #tpu.memory_space<vmem>>, vector<1x64xf32>
    %61 = vector.shape_cast %60 : vector<1x64xf32> to vector<64xf32>
    %62 = vector.shape_cast %61 : vector<64xf32> to vector<1x64xf32>
    %63 = vector.broadcast %62 : vector<1x64xf32> to vector<16x64xf32>
    %64 = arith.mulf %63, %59 : vector<16x64xf32>
    %65 = arith.addf %58, %64 : vector<16x64xf32>
    %c7 = arith.constant 7 : index
    %c0_16 = arith.constant 0 : index
    %66 = vector.load %arg2[%c7, %c0_16] : memref<36x64xf32, #tpu.memory_space<vmem>>, vector<1x64xf32>
    %67 = vector.shape_cast %66 : vector<1x64xf32> to vector<64xf32>
    %68 = vector.shape_cast %67 : vector<64xf32> to vector<1x64xf32>
    %69 = vector.broadcast %68 : vector<1x64xf32> to vector<16x64xf32>
    %70 = arith.mulf %69, %18 : vector<16x64xf32>
    %71 = arith.addf %65, %70 : vector<16x64xf32>
    %c63_i32_17 = arith.constant 63 : i32
    %72 = tpu.dynamic_rotate %18 by %c63_i32_17 dim 1 : vector<16x64xf32>, i32 -> vector<16x64xf32>
    %c8 = arith.constant 8 : index
    %c0_18 = arith.constant 0 : index
    %73 = vector.load %arg2[%c8, %c0_18] : memref<36x64xf32, #tpu.memory_space<vmem>>, vector<1x64xf32>
    %74 = vector.shape_cast %73 : vector<1x64xf32> to vector<64xf32>
    %75 = vector.shape_cast %74 : vector<64xf32> to vector<1x64xf32>
    %76 = vector.broadcast %75 : vector<1x64xf32> to vector<16x64xf32>
    %77 = arith.mulf %76, %72 : vector<16x64xf32>
    %78 = arith.addf %71, %77 : vector<16x64xf32>
    %c0_19 = arith.constant 0 : index
    %c1_20 = arith.constant 1 : index
    %c0_21 = arith.constant 0 : index
    %c0_22 = arith.constant 0 : index
    %79 = vector.load %arg1[%c0_19, %c1_20, %c0_21, %c0_22] : memref<1x4x16x16xf32, #tpu.memory_space<vmem>>, vector<1x1x16x16xf32>
    %80 = vector.shape_cast %79 : vector<1x1x16x16xf32> to vector<16x16xf32>
    %81 = tpu.concatenate %80, %80, %80, %80 in 1 : vector<16x16xf32>, vector<16x16xf32>, vector<16x16xf32>, vector<16x16xf32> -> vector<16x64xf32>
    %c1_i32_23 = arith.constant 1 : i32
    %82 = tpu.dynamic_rotate %81 by %c1_i32_23 dim 0 : vector<16x64xf32>, i32 -> vector<16x64xf32>
    %83 = vector.broadcast %4 : vector<16x1xf32> to vector<16x64xf32>
    %84 = arith.mulf %82, %83 : vector<16x64xf32>
    %c15_i32_24 = arith.constant 15 : i32
    %85 = tpu.dynamic_rotate %81 by %c15_i32_24 dim 0 : vector<16x64xf32>, i32 -> vector<16x64xf32>
    %86 = vector.broadcast %8 : vector<16x1xf32> to vector<16x64xf32>
    %87 = arith.mulf %85, %86 : vector<16x64xf32>
    %c1_i32_25 = arith.constant 1 : i32
    %88 = tpu.dynamic_rotate %84 by %c1_i32_25 dim 1 : vector<16x64xf32>, i32 -> vector<16x64xf32>
    %c9 = arith.constant 9 : index
    %c0_26 = arith.constant 0 : index
    %89 = vector.load %arg2[%c9, %c0_26] : memref<36x64xf32, #tpu.memory_space<vmem>>, vector<1x64xf32>
    %90 = vector.shape_cast %89 : vector<1x64xf32> to vector<64xf32>
    %91 = vector.shape_cast %90 : vector<64xf32> to vector<1x64xf32>
    %92 = vector.broadcast %91 : vector<1x64xf32> to vector<16x64xf32>
    %93 = arith.mulf %92, %88 : vector<16x64xf32>
    %94 = arith.addf %78, %93 : vector<16x64xf32>
    %c10 = arith.constant 10 : index
    %c0_27 = arith.constant 0 : index
    %95 = vector.load %arg2[%c10, %c0_27] : memref<36x64xf32, #tpu.memory_space<vmem>>, vector<1x64xf32>
    %96 = vector.shape_cast %95 : vector<1x64xf32> to vector<64xf32>
    %97 = vector.shape_cast %96 : vector<64xf32> to vector<1x64xf32>
    %98 = vector.broadcast %97 : vector<1x64xf32> to vector<16x64xf32>
    %99 = arith.mulf %98, %84 : vector<16x64xf32>
    %100 = arith.addf %94, %99 : vector<16x64xf32>
    %c63_i32_28 = arith.constant 63 : i32
    %101 = tpu.dynamic_rotate %84 by %c63_i32_28 dim 1 : vector<16x64xf32>, i32 -> vector<16x64xf32>
    %c11 = arith.constant 11 : index
    %c0_29 = arith.constant 0 : index
    %102 = vector.load %arg2[%c11, %c0_29] : memref<36x64xf32, #tpu.memory_space<vmem>>, vector<1x64xf32>
    %103 = vector.shape_cast %102 : vector<1x64xf32> to vector<64xf32>
    %104 = vector.shape_cast %103 : vector<64xf32> to vector<1x64xf32>
    %105 = vector.broadcast %104 : vector<1x64xf32> to vector<16x64xf32>
    %106 = arith.mulf %105, %101 : vector<16x64xf32>
    %107 = arith.addf %100, %106 : vector<16x64xf32>
    %c1_i32_30 = arith.constant 1 : i32
    %108 = tpu.dynamic_rotate %81 by %c1_i32_30 dim 1 : vector<16x64xf32>, i32 -> vector<16x64xf32>
    %c12 = arith.constant 12 : index
    %c0_31 = arith.constant 0 : index
    %109 = vector.load %arg2[%c12, %c0_31] : memref<36x64xf32, #tpu.memory_space<vmem>>, vector<1x64xf32>
    %110 = vector.shape_cast %109 : vector<1x64xf32> to vector<64xf32>
    %111 = vector.shape_cast %110 : vector<64xf32> to vector<1x64xf32>
    %112 = vector.broadcast %111 : vector<1x64xf32> to vector<16x64xf32>
    %113 = arith.mulf %112, %108 : vector<16x64xf32>
    %114 = arith.addf %107, %113 : vector<16x64xf32>
    %c13 = arith.constant 13 : index
    %c0_32 = arith.constant 0 : index
    %115 = vector.load %arg2[%c13, %c0_32] : memref<36x64xf32, #tpu.memory_space<vmem>>, vector<1x64xf32>
    %116 = vector.shape_cast %115 : vector<1x64xf32> to vector<64xf32>
    %117 = vector.shape_cast %116 : vector<64xf32> to vector<1x64xf32>
    %118 = vector.broadcast %117 : vector<1x64xf32> to vector<16x64xf32>
    %119 = arith.mulf %118, %81 : vector<16x64xf32>
    %120 = arith.addf %114, %119 : vector<16x64xf32>
    %c63_i32_33 = arith.constant 63 : i32
    %121 = tpu.dynamic_rotate %81 by %c63_i32_33 dim 1 : vector<16x64xf32>, i32 -> vector<16x64xf32>
    %c14 = arith.constant 14 : index
    %c0_34 = arith.constant 0 : index
    %122 = vector.load %arg2[%c14, %c0_34] : memref<36x64xf32, #tpu.memory_space<vmem>>, vector<1x64xf32>
    %123 = vector.shape_cast %122 : vector<1x64xf32> to vector<64xf32>
    %124 = vector.shape_cast %123 : vector<64xf32> to vector<1x64xf32>
    %125 = vector.broadcast %124 : vector<1x64xf32> to vector<16x64xf32>
    %126 = arith.mulf %125, %121 : vector<16x64xf32>
    %127 = arith.addf %120, %126 : vector<16x64xf32>
    %c1_i32_35 = arith.constant 1 : i32
    %128 = tpu.dynamic_rotate %87 by %c1_i32_35 dim 1 : vector<16x64xf32>, i32 -> vector<16x64xf32>
    %c15 = arith.constant 15 : index
    %c0_36 = arith.constant 0 : index
    %129 = vector.load %arg2[%c15, %c0_36] : memref<36x64xf32, #tpu.memory_space<vmem>>, vector<1x64xf32>
    %130 = vector.shape_cast %129 : vector<1x64xf32> to vector<64xf32>
    %131 = vector.shape_cast %130 : vector<64xf32> to vector<1x64xf32>
    %132 = vector.broadcast %131 : vector<1x64xf32> to vector<16x64xf32>
    %133 = arith.mulf %132, %128 : vector<16x64xf32>
    %134 = arith.addf %127, %133 : vector<16x64xf32>
    %c16 = arith.constant 16 : index
    %c0_37 = arith.constant 0 : index
    %135 = vector.load %arg2[%c16, %c0_37] : memref<36x64xf32, #tpu.memory_space<vmem>>, vector<1x64xf32>
    %136 = vector.shape_cast %135 : vector<1x64xf32> to vector<64xf32>
    %137 = vector.shape_cast %136 : vector<64xf32> to vector<1x64xf32>
    %138 = vector.broadcast %137 : vector<1x64xf32> to vector<16x64xf32>
    %139 = arith.mulf %138, %87 : vector<16x64xf32>
    %140 = arith.addf %134, %139 : vector<16x64xf32>
    %c63_i32_38 = arith.constant 63 : i32
    %141 = tpu.dynamic_rotate %87 by %c63_i32_38 dim 1 : vector<16x64xf32>, i32 -> vector<16x64xf32>
    %c17 = arith.constant 17 : index
    %c0_39 = arith.constant 0 : index
    %142 = vector.load %arg2[%c17, %c0_39] : memref<36x64xf32, #tpu.memory_space<vmem>>, vector<1x64xf32>
    %143 = vector.shape_cast %142 : vector<1x64xf32> to vector<64xf32>
    %144 = vector.shape_cast %143 : vector<64xf32> to vector<1x64xf32>
    %145 = vector.broadcast %144 : vector<1x64xf32> to vector<16x64xf32>
    %146 = arith.mulf %145, %141 : vector<16x64xf32>
    %147 = arith.addf %140, %146 : vector<16x64xf32>
    %c0_40 = arith.constant 0 : index
    %c2_41 = arith.constant 2 : index
    %c0_42 = arith.constant 0 : index
    %c0_43 = arith.constant 0 : index
    %148 = vector.load %arg1[%c0_40, %c2_41, %c0_42, %c0_43] : memref<1x4x16x16xf32, #tpu.memory_space<vmem>>, vector<1x1x16x16xf32>
    %149 = vector.shape_cast %148 : vector<1x1x16x16xf32> to vector<16x16xf32>
    %150 = tpu.concatenate %149, %149, %149, %149 in 1 : vector<16x16xf32>, vector<16x16xf32>, vector<16x16xf32>, vector<16x16xf32> -> vector<16x64xf32>
    %c1_i32_44 = arith.constant 1 : i32
    %151 = tpu.dynamic_rotate %150 by %c1_i32_44 dim 0 : vector<16x64xf32>, i32 -> vector<16x64xf32>
    %152 = vector.broadcast %4 : vector<16x1xf32> to vector<16x64xf32>
    %153 = arith.mulf %151, %152 : vector<16x64xf32>
    %c15_i32_45 = arith.constant 15 : i32
    %154 = tpu.dynamic_rotate %150 by %c15_i32_45 dim 0 : vector<16x64xf32>, i32 -> vector<16x64xf32>
    %155 = vector.broadcast %8 : vector<16x1xf32> to vector<16x64xf32>
    %156 = arith.mulf %154, %155 : vector<16x64xf32>
    %c1_i32_46 = arith.constant 1 : i32
    %157 = tpu.dynamic_rotate %153 by %c1_i32_46 dim 1 : vector<16x64xf32>, i32 -> vector<16x64xf32>
    %c18 = arith.constant 18 : index
    %c0_47 = arith.constant 0 : index
    %158 = vector.load %arg2[%c18, %c0_47] : memref<36x64xf32, #tpu.memory_space<vmem>>, vector<1x64xf32>
    %159 = vector.shape_cast %158 : vector<1x64xf32> to vector<64xf32>
    %160 = vector.shape_cast %159 : vector<64xf32> to vector<1x64xf32>
    %161 = vector.broadcast %160 : vector<1x64xf32> to vector<16x64xf32>
    %162 = arith.mulf %161, %157 : vector<16x64xf32>
    %163 = arith.addf %147, %162 : vector<16x64xf32>
    %c19 = arith.constant 19 : index
    %c0_48 = arith.constant 0 : index
    %164 = vector.load %arg2[%c19, %c0_48] : memref<36x64xf32, #tpu.memory_space<vmem>>, vector<1x64xf32>
    %165 = vector.shape_cast %164 : vector<1x64xf32> to vector<64xf32>
    %166 = vector.shape_cast %165 : vector<64xf32> to vector<1x64xf32>
    %167 = vector.broadcast %166 : vector<1x64xf32> to vector<16x64xf32>
    %168 = arith.mulf %167, %153 : vector<16x64xf32>
    %169 = arith.addf %163, %168 : vector<16x64xf32>
    %c63_i32_49 = arith.constant 63 : i32
    %170 = tpu.dynamic_rotate %153 by %c63_i32_49 dim 1 : vector<16x64xf32>, i32 -> vector<16x64xf32>
    %c20 = arith.constant 20 : index
    %c0_50 = arith.constant 0 : index
    %171 = vector.load %arg2[%c20, %c0_50] : memref<36x64xf32, #tpu.memory_space<vmem>>, vector<1x64xf32>
    %172 = vector.shape_cast %171 : vector<1x64xf32> to vector<64xf32>
    %173 = vector.shape_cast %172 : vector<64xf32> to vector<1x64xf32>
    %174 = vector.broadcast %173 : vector<1x64xf32> to vector<16x64xf32>
    %175 = arith.mulf %174, %170 : vector<16x64xf32>
    %176 = arith.addf %169, %175 : vector<16x64xf32>
    %c1_i32_51 = arith.constant 1 : i32
    %177 = tpu.dynamic_rotate %150 by %c1_i32_51 dim 1 : vector<16x64xf32>, i32 -> vector<16x64xf32>
    %c21 = arith.constant 21 : index
    %c0_52 = arith.constant 0 : index
    %178 = vector.load %arg2[%c21, %c0_52] : memref<36x64xf32, #tpu.memory_space<vmem>>, vector<1x64xf32>
    %179 = vector.shape_cast %178 : vector<1x64xf32> to vector<64xf32>
    %180 = vector.shape_cast %179 : vector<64xf32> to vector<1x64xf32>
    %181 = vector.broadcast %180 : vector<1x64xf32> to vector<16x64xf32>
    %182 = arith.mulf %181, %177 : vector<16x64xf32>
    %183 = arith.addf %176, %182 : vector<16x64xf32>
    %c22 = arith.constant 22 : index
    %c0_53 = arith.constant 0 : index
    %184 = vector.load %arg2[%c22, %c0_53] : memref<36x64xf32, #tpu.memory_space<vmem>>, vector<1x64xf32>
    %185 = vector.shape_cast %184 : vector<1x64xf32> to vector<64xf32>
    %186 = vector.shape_cast %185 : vector<64xf32> to vector<1x64xf32>
    %187 = vector.broadcast %186 : vector<1x64xf32> to vector<16x64xf32>
    %188 = arith.mulf %187, %150 : vector<16x64xf32>
    %189 = arith.addf %183, %188 : vector<16x64xf32>
    %c63_i32_54 = arith.constant 63 : i32
    %190 = tpu.dynamic_rotate %150 by %c63_i32_54 dim 1 : vector<16x64xf32>, i32 -> vector<16x64xf32>
    %c23 = arith.constant 23 : index
    %c0_55 = arith.constant 0 : index
    %191 = vector.load %arg2[%c23, %c0_55] : memref<36x64xf32, #tpu.memory_space<vmem>>, vector<1x64xf32>
    %192 = vector.shape_cast %191 : vector<1x64xf32> to vector<64xf32>
    %193 = vector.shape_cast %192 : vector<64xf32> to vector<1x64xf32>
    %194 = vector.broadcast %193 : vector<1x64xf32> to vector<16x64xf32>
    %195 = arith.mulf %194, %190 : vector<16x64xf32>
    %196 = arith.addf %189, %195 : vector<16x64xf32>
    %c1_i32_56 = arith.constant 1 : i32
    %197 = tpu.dynamic_rotate %156 by %c1_i32_56 dim 1 : vector<16x64xf32>, i32 -> vector<16x64xf32>
    %c24 = arith.constant 24 : index
    %c0_57 = arith.constant 0 : index
    %198 = vector.load %arg2[%c24, %c0_57] : memref<36x64xf32, #tpu.memory_space<vmem>>, vector<1x64xf32>
    %199 = vector.shape_cast %198 : vector<1x64xf32> to vector<64xf32>
    %200 = vector.shape_cast %199 : vector<64xf32> to vector<1x64xf32>
    %201 = vector.broadcast %200 : vector<1x64xf32> to vector<16x64xf32>
    %202 = arith.mulf %201, %197 : vector<16x64xf32>
    %203 = arith.addf %196, %202 : vector<16x64xf32>
    %c25 = arith.constant 25 : index
    %c0_58 = arith.constant 0 : index
    %204 = vector.load %arg2[%c25, %c0_58] : memref<36x64xf32, #tpu.memory_space<vmem>>, vector<1x64xf32>
    %205 = vector.shape_cast %204 : vector<1x64xf32> to vector<64xf32>
    %206 = vector.shape_cast %205 : vector<64xf32> to vector<1x64xf32>
    %207 = vector.broadcast %206 : vector<1x64xf32> to vector<16x64xf32>
    %208 = arith.mulf %207, %156 : vector<16x64xf32>
    %209 = arith.addf %203, %208 : vector<16x64xf32>
    %c63_i32_59 = arith.constant 63 : i32
    %210 = tpu.dynamic_rotate %156 by %c63_i32_59 dim 1 : vector<16x64xf32>, i32 -> vector<16x64xf32>
    %c26 = arith.constant 26 : index
    %c0_60 = arith.constant 0 : index
    %211 = vector.load %arg2[%c26, %c0_60] : memref<36x64xf32, #tpu.memory_space<vmem>>, vector<1x64xf32>
    %212 = vector.shape_cast %211 : vector<1x64xf32> to vector<64xf32>
    %213 = vector.shape_cast %212 : vector<64xf32> to vector<1x64xf32>
    %214 = vector.broadcast %213 : vector<1x64xf32> to vector<16x64xf32>
    %215 = arith.mulf %214, %210 : vector<16x64xf32>
    %216 = arith.addf %209, %215 : vector<16x64xf32>
    %c0_61 = arith.constant 0 : index
    %c3_62 = arith.constant 3 : index
    %c0_63 = arith.constant 0 : index
    %c0_64 = arith.constant 0 : index
    %217 = vector.load %arg1[%c0_61, %c3_62, %c0_63, %c0_64] : memref<1x4x16x16xf32, #tpu.memory_space<vmem>>, vector<1x1x16x16xf32>
    %218 = vector.shape_cast %217 : vector<1x1x16x16xf32> to vector<16x16xf32>
    %219 = tpu.concatenate %218, %218, %218, %218 in 1 : vector<16x16xf32>, vector<16x16xf32>, vector<16x16xf32>, vector<16x16xf32> -> vector<16x64xf32>
    %c1_i32_65 = arith.constant 1 : i32
    %220 = tpu.dynamic_rotate %219 by %c1_i32_65 dim 0 : vector<16x64xf32>, i32 -> vector<16x64xf32>
    %221 = vector.broadcast %4 : vector<16x1xf32> to vector<16x64xf32>
    %222 = arith.mulf %220, %221 : vector<16x64xf32>
    %c15_i32_66 = arith.constant 15 : i32
    %223 = tpu.dynamic_rotate %219 by %c15_i32_66 dim 0 : vector<16x64xf32>, i32 -> vector<16x64xf32>
    %224 = vector.broadcast %8 : vector<16x1xf32> to vector<16x64xf32>
    %225 = arith.mulf %223, %224 : vector<16x64xf32>
    %c1_i32_67 = arith.constant 1 : i32
    %226 = tpu.dynamic_rotate %222 by %c1_i32_67 dim 1 : vector<16x64xf32>, i32 -> vector<16x64xf32>
    %c27 = arith.constant 27 : index
    %c0_68 = arith.constant 0 : index
    %227 = vector.load %arg2[%c27, %c0_68] : memref<36x64xf32, #tpu.memory_space<vmem>>, vector<1x64xf32>
    %228 = vector.shape_cast %227 : vector<1x64xf32> to vector<64xf32>
    %229 = vector.shape_cast %228 : vector<64xf32> to vector<1x64xf32>
    %230 = vector.broadcast %229 : vector<1x64xf32> to vector<16x64xf32>
    %231 = arith.mulf %230, %226 : vector<16x64xf32>
    %232 = arith.addf %216, %231 : vector<16x64xf32>
    %c28 = arith.constant 28 : index
    %c0_69 = arith.constant 0 : index
    %233 = vector.load %arg2[%c28, %c0_69] : memref<36x64xf32, #tpu.memory_space<vmem>>, vector<1x64xf32>
    %234 = vector.shape_cast %233 : vector<1x64xf32> to vector<64xf32>
    %235 = vector.shape_cast %234 : vector<64xf32> to vector<1x64xf32>
    %236 = vector.broadcast %235 : vector<1x64xf32> to vector<16x64xf32>
    %237 = arith.mulf %236, %222 : vector<16x64xf32>
    %238 = arith.addf %232, %237 : vector<16x64xf32>
    %c63_i32_70 = arith.constant 63 : i32
    %239 = tpu.dynamic_rotate %222 by %c63_i32_70 dim 1 : vector<16x64xf32>, i32 -> vector<16x64xf32>
    %c29 = arith.constant 29 : index
    %c0_71 = arith.constant 0 : index
    %240 = vector.load %arg2[%c29, %c0_71] : memref<36x64xf32, #tpu.memory_space<vmem>>, vector<1x64xf32>
    %241 = vector.shape_cast %240 : vector<1x64xf32> to vector<64xf32>
    %242 = vector.shape_cast %241 : vector<64xf32> to vector<1x64xf32>
    %243 = vector.broadcast %242 : vector<1x64xf32> to vector<16x64xf32>
    %244 = arith.mulf %243, %239 : vector<16x64xf32>
    %245 = arith.addf %238, %244 : vector<16x64xf32>
    %c1_i32_72 = arith.constant 1 : i32
    %246 = tpu.dynamic_rotate %219 by %c1_i32_72 dim 1 : vector<16x64xf32>, i32 -> vector<16x64xf32>
    %c30 = arith.constant 30 : index
    %c0_73 = arith.constant 0 : index
    %247 = vector.load %arg2[%c30, %c0_73] : memref<36x64xf32, #tpu.memory_space<vmem>>, vector<1x64xf32>
    %248 = vector.shape_cast %247 : vector<1x64xf32> to vector<64xf32>
    %249 = vector.shape_cast %248 : vector<64xf32> to vector<1x64xf32>
    %250 = vector.broadcast %249 : vector<1x64xf32> to vector<16x64xf32>
    %251 = arith.mulf %250, %246 : vector<16x64xf32>
    %252 = arith.addf %245, %251 : vector<16x64xf32>
    %c31 = arith.constant 31 : index
    %c0_74 = arith.constant 0 : index
    %253 = vector.load %arg2[%c31, %c0_74] : memref<36x64xf32, #tpu.memory_space<vmem>>, vector<1x64xf32>
    %254 = vector.shape_cast %253 : vector<1x64xf32> to vector<64xf32>
    %255 = vector.shape_cast %254 : vector<64xf32> to vector<1x64xf32>
    %256 = vector.broadcast %255 : vector<1x64xf32> to vector<16x64xf32>
    %257 = arith.mulf %256, %219 : vector<16x64xf32>
    %258 = arith.addf %252, %257 : vector<16x64xf32>
    %c63_i32_75 = arith.constant 63 : i32
    %259 = tpu.dynamic_rotate %219 by %c63_i32_75 dim 1 : vector<16x64xf32>, i32 -> vector<16x64xf32>
    %c32 = arith.constant 32 : index
    %c0_76 = arith.constant 0 : index
    %260 = vector.load %arg2[%c32, %c0_76] : memref<36x64xf32, #tpu.memory_space<vmem>>, vector<1x64xf32>
    %261 = vector.shape_cast %260 : vector<1x64xf32> to vector<64xf32>
    %262 = vector.shape_cast %261 : vector<64xf32> to vector<1x64xf32>
    %263 = vector.broadcast %262 : vector<1x64xf32> to vector<16x64xf32>
    %264 = arith.mulf %263, %259 : vector<16x64xf32>
    %265 = arith.addf %258, %264 : vector<16x64xf32>
    %c1_i32_77 = arith.constant 1 : i32
    %266 = tpu.dynamic_rotate %225 by %c1_i32_77 dim 1 : vector<16x64xf32>, i32 -> vector<16x64xf32>
    %c33 = arith.constant 33 : index
    %c0_78 = arith.constant 0 : index
    %267 = vector.load %arg2[%c33, %c0_78] : memref<36x64xf32, #tpu.memory_space<vmem>>, vector<1x64xf32>
    %268 = vector.shape_cast %267 : vector<1x64xf32> to vector<64xf32>
    %269 = vector.shape_cast %268 : vector<64xf32> to vector<1x64xf32>
    %270 = vector.broadcast %269 : vector<1x64xf32> to vector<16x64xf32>
    %271 = arith.mulf %270, %266 : vector<16x64xf32>
    %272 = arith.addf %265, %271 : vector<16x64xf32>
    %c34 = arith.constant 34 : index
    %c0_79 = arith.constant 0 : index
    %273 = vector.load %arg2[%c34, %c0_79] : memref<36x64xf32, #tpu.memory_space<vmem>>, vector<1x64xf32>
    %274 = vector.shape_cast %273 : vector<1x64xf32> to vector<64xf32>
    %275 = vector.shape_cast %274 : vector<64xf32> to vector<1x64xf32>
    %276 = vector.broadcast %275 : vector<1x64xf32> to vector<16x64xf32>
    %277 = arith.mulf %276, %225 : vector<16x64xf32>
    %278 = arith.addf %272, %277 : vector<16x64xf32>
    %c63_i32_80 = arith.constant 63 : i32
    %279 = tpu.dynamic_rotate %225 by %c63_i32_80 dim 1 : vector<16x64xf32>, i32 -> vector<16x64xf32>
    %c35 = arith.constant 35 : index
    %c0_81 = arith.constant 0 : index
    %280 = vector.load %arg2[%c35, %c0_81] : memref<36x64xf32, #tpu.memory_space<vmem>>, vector<1x64xf32>
    %281 = vector.shape_cast %280 : vector<1x64xf32> to vector<64xf32>
    %282 = vector.shape_cast %281 : vector<64xf32> to vector<1x64xf32>
    %283 = vector.broadcast %282 : vector<1x64xf32> to vector<16x64xf32>
    %284 = arith.mulf %283, %279 : vector<16x64xf32>
    %285 = arith.addf %278, %284 : vector<16x64xf32>
    %cst_82 = arith.constant 0.000000e+00 : f32
    %286 = vector.broadcast %cst_82 : f32 to vector<16x64xf32>
    %287 = arith.maximumf %285, %286 : vector<16x64xf32>
    %cst_83 = arith.constant 0.000000e+00 : f32
    %288 = vector.broadcast %cst_83 : f32 to vector<16x128xf32>
    %289 = vector.extract_strided_slice %287 {offsets = [0, 0], sizes = [16, 16], strides = [1, 1]} : vector<16x64xf32> to vector<16x16xf32>
    %290 = tpu.concatenate %289, %289, %289, %289, %289, %289, %289, %289 in 1 : vector<16x16xf32>, vector<16x16xf32>, vector<16x16xf32>, vector<16x16xf32>, vector<16x16xf32>, vector<16x16xf32>, vector<16x16xf32>, vector<16x16xf32> -> vector<16x128xf32>
    %c1_i32_84 = arith.constant 1 : i32
    %291 = tpu.dynamic_rotate %290 by %c1_i32_84 dim 0 : vector<16x128xf32>, i32 -> vector<16x128xf32>
    %292 = vector.broadcast %4 : vector<16x1xf32> to vector<16x128xf32>
    %293 = arith.mulf %291, %292 : vector<16x128xf32>
    %c15_i32_85 = arith.constant 15 : i32
    %294 = tpu.dynamic_rotate %290 by %c15_i32_85 dim 0 : vector<16x128xf32>, i32 -> vector<16x128xf32>
    %295 = vector.broadcast %8 : vector<16x1xf32> to vector<16x128xf32>
    %296 = arith.mulf %294, %295 : vector<16x128xf32>
    %c1_i32_86 = arith.constant 1 : i32
    %297 = tpu.dynamic_rotate %293 by %c1_i32_86 dim 1 : vector<16x128xf32>, i32 -> vector<16x128xf32>
    %c0_87 = arith.constant 0 : index
    %c0_88 = arith.constant 0 : index
    %298 = vector.load %arg3[%c0_87, %c0_88] : memref<36x128xf32, #tpu.memory_space<vmem>>, vector<1x128xf32>
    %299 = vector.shape_cast %298 : vector<1x128xf32> to vector<128xf32>
    %300 = vector.shape_cast %299 : vector<128xf32> to vector<1x128xf32>
    %301 = vector.broadcast %300 : vector<1x128xf32> to vector<16x128xf32>
    %302 = arith.mulf %301, %297 : vector<16x128xf32>
    %303 = arith.addf %288, %302 : vector<16x128xf32>
    %c1_89 = arith.constant 1 : index
    %c0_90 = arith.constant 0 : index
    %304 = vector.load %arg3[%c1_89, %c0_90] : memref<36x128xf32, #tpu.memory_space<vmem>>, vector<1x128xf32>
    %305 = vector.shape_cast %304 : vector<1x128xf32> to vector<128xf32>
    %306 = vector.shape_cast %305 : vector<128xf32> to vector<1x128xf32>
    %307 = vector.broadcast %306 : vector<1x128xf32> to vector<16x128xf32>
    %308 = arith.mulf %307, %293 : vector<16x128xf32>
    %309 = arith.addf %303, %308 : vector<16x128xf32>
    %c127_i32 = arith.constant 127 : i32
    %310 = tpu.dynamic_rotate %293 by %c127_i32 dim 1 : vector<16x128xf32>, i32 -> vector<16x128xf32>
    %c2_91 = arith.constant 2 : index
    %c0_92 = arith.constant 0 : index
    %311 = vector.load %arg3[%c2_91, %c0_92] : memref<36x128xf32, #tpu.memory_space<vmem>>, vector<1x128xf32>
    %312 = vector.shape_cast %311 : vector<1x128xf32> to vector<128xf32>
    %313 = vector.shape_cast %312 : vector<128xf32> to vector<1x128xf32>
    %314 = vector.broadcast %313 : vector<1x128xf32> to vector<16x128xf32>
    %315 = arith.mulf %314, %310 : vector<16x128xf32>
    %316 = arith.addf %309, %315 : vector<16x128xf32>
    %c1_i32_93 = arith.constant 1 : i32
    %317 = tpu.dynamic_rotate %290 by %c1_i32_93 dim 1 : vector<16x128xf32>, i32 -> vector<16x128xf32>
    %c3_94 = arith.constant 3 : index
    %c0_95 = arith.constant 0 : index
    %318 = vector.load %arg3[%c3_94, %c0_95] : memref<36x128xf32, #tpu.memory_space<vmem>>, vector<1x128xf32>
    %319 = vector.shape_cast %318 : vector<1x128xf32> to vector<128xf32>
    %320 = vector.shape_cast %319 : vector<128xf32> to vector<1x128xf32>
    %321 = vector.broadcast %320 : vector<1x128xf32> to vector<16x128xf32>
    %322 = arith.mulf %321, %317 : vector<16x128xf32>
    %323 = arith.addf %316, %322 : vector<16x128xf32>
    %c4_96 = arith.constant 4 : index
    %c0_97 = arith.constant 0 : index
    %324 = vector.load %arg3[%c4_96, %c0_97] : memref<36x128xf32, #tpu.memory_space<vmem>>, vector<1x128xf32>
    %325 = vector.shape_cast %324 : vector<1x128xf32> to vector<128xf32>
    %326 = vector.shape_cast %325 : vector<128xf32> to vector<1x128xf32>
    %327 = vector.broadcast %326 : vector<1x128xf32> to vector<16x128xf32>
    %328 = arith.mulf %327, %290 : vector<16x128xf32>
    %329 = arith.addf %323, %328 : vector<16x128xf32>
    %c127_i32_98 = arith.constant 127 : i32
    %330 = tpu.dynamic_rotate %290 by %c127_i32_98 dim 1 : vector<16x128xf32>, i32 -> vector<16x128xf32>
    %c5_99 = arith.constant 5 : index
    %c0_100 = arith.constant 0 : index
    %331 = vector.load %arg3[%c5_99, %c0_100] : memref<36x128xf32, #tpu.memory_space<vmem>>, vector<1x128xf32>
    %332 = vector.shape_cast %331 : vector<1x128xf32> to vector<128xf32>
    %333 = vector.shape_cast %332 : vector<128xf32> to vector<1x128xf32>
    %334 = vector.broadcast %333 : vector<1x128xf32> to vector<16x128xf32>
    %335 = arith.mulf %334, %330 : vector<16x128xf32>
    %336 = arith.addf %329, %335 : vector<16x128xf32>
    %c1_i32_101 = arith.constant 1 : i32
    %337 = tpu.dynamic_rotate %296 by %c1_i32_101 dim 1 : vector<16x128xf32>, i32 -> vector<16x128xf32>
    %c6_102 = arith.constant 6 : index
    %c0_103 = arith.constant 0 : index
    %338 = vector.load %arg3[%c6_102, %c0_103] : memref<36x128xf32, #tpu.memory_space<vmem>>, vector<1x128xf32>
    %339 = vector.shape_cast %338 : vector<1x128xf32> to vector<128xf32>
    %340 = vector.shape_cast %339 : vector<128xf32> to vector<1x128xf32>
    %341 = vector.broadcast %340 : vector<1x128xf32> to vector<16x128xf32>
    %342 = arith.mulf %341, %337 : vector<16x128xf32>
    %343 = arith.addf %336, %342 : vector<16x128xf32>
    %c7_104 = arith.constant 7 : index
    %c0_105 = arith.constant 0 : index
    %344 = vector.load %arg3[%c7_104, %c0_105] : memref<36x128xf32, #tpu.memory_space<vmem>>, vector<1x128xf32>
    %345 = vector.shape_cast %344 : vector<1x128xf32> to vector<128xf32>
    %346 = vector.shape_cast %345 : vector<128xf32> to vector<1x128xf32>
    %347 = vector.broadcast %346 : vector<1x128xf32> to vector<16x128xf32>
    %348 = arith.mulf %347, %296 : vector<16x128xf32>
    %349 = arith.addf %343, %348 : vector<16x128xf32>
    %c127_i32_106 = arith.constant 127 : i32
    %350 = tpu.dynamic_rotate %296 by %c127_i32_106 dim 1 : vector<16x128xf32>, i32 -> vector<16x128xf32>
    %c8_107 = arith.constant 8 : index
    %c0_108 = arith.constant 0 : index
    %351 = vector.load %arg3[%c8_107, %c0_108] : memref<36x128xf32, #tpu.memory_space<vmem>>, vector<1x128xf32>
    %352 = vector.shape_cast %351 : vector<1x128xf32> to vector<128xf32>
    %353 = vector.shape_cast %352 : vector<128xf32> to vector<1x128xf32>
    %354 = vector.broadcast %353 : vector<1x128xf32> to vector<16x128xf32>
    %355 = arith.mulf %354, %350 : vector<16x128xf32>
    %356 = arith.addf %349, %355 : vector<16x128xf32>
    %357 = vector.extract_strided_slice %287 {offsets = [0, 16], sizes = [16, 16], strides = [1, 1]} : vector<16x64xf32> to vector<16x16xf32>
    %358 = tpu.concatenate %357, %357, %357, %357, %357, %357, %357, %357 in 1 : vector<16x16xf32>, vector<16x16xf32>, vector<16x16xf32>, vector<16x16xf32>, vector<16x16xf32>, vector<16x16xf32>, vector<16x16xf32>, vector<16x16xf32> -> vector<16x128xf32>
    %c1_i32_109 = arith.constant 1 : i32
    %359 = tpu.dynamic_rotate %358 by %c1_i32_109 dim 0 : vector<16x128xf32>, i32 -> vector<16x128xf32>
    %360 = vector.broadcast %4 : vector<16x1xf32> to vector<16x128xf32>
    %361 = arith.mulf %359, %360 : vector<16x128xf32>
    %c15_i32_110 = arith.constant 15 : i32
    %362 = tpu.dynamic_rotate %358 by %c15_i32_110 dim 0 : vector<16x128xf32>, i32 -> vector<16x128xf32>
    %363 = vector.broadcast %8 : vector<16x1xf32> to vector<16x128xf32>
    %364 = arith.mulf %362, %363 : vector<16x128xf32>
    %c1_i32_111 = arith.constant 1 : i32
    %365 = tpu.dynamic_rotate %361 by %c1_i32_111 dim 1 : vector<16x128xf32>, i32 -> vector<16x128xf32>
    %c9_112 = arith.constant 9 : index
    %c0_113 = arith.constant 0 : index
    %366 = vector.load %arg3[%c9_112, %c0_113] : memref<36x128xf32, #tpu.memory_space<vmem>>, vector<1x128xf32>
    %367 = vector.shape_cast %366 : vector<1x128xf32> to vector<128xf32>
    %368 = vector.shape_cast %367 : vector<128xf32> to vector<1x128xf32>
    %369 = vector.broadcast %368 : vector<1x128xf32> to vector<16x128xf32>
    %370 = arith.mulf %369, %365 : vector<16x128xf32>
    %371 = arith.addf %356, %370 : vector<16x128xf32>
    %c10_114 = arith.constant 10 : index
    %c0_115 = arith.constant 0 : index
    %372 = vector.load %arg3[%c10_114, %c0_115] : memref<36x128xf32, #tpu.memory_space<vmem>>, vector<1x128xf32>
    %373 = vector.shape_cast %372 : vector<1x128xf32> to vector<128xf32>
    %374 = vector.shape_cast %373 : vector<128xf32> to vector<1x128xf32>
    %375 = vector.broadcast %374 : vector<1x128xf32> to vector<16x128xf32>
    %376 = arith.mulf %375, %361 : vector<16x128xf32>
    %377 = arith.addf %371, %376 : vector<16x128xf32>
    %c127_i32_116 = arith.constant 127 : i32
    %378 = tpu.dynamic_rotate %361 by %c127_i32_116 dim 1 : vector<16x128xf32>, i32 -> vector<16x128xf32>
    %c11_117 = arith.constant 11 : index
    %c0_118 = arith.constant 0 : index
    %379 = vector.load %arg3[%c11_117, %c0_118] : memref<36x128xf32, #tpu.memory_space<vmem>>, vector<1x128xf32>
    %380 = vector.shape_cast %379 : vector<1x128xf32> to vector<128xf32>
    %381 = vector.shape_cast %380 : vector<128xf32> to vector<1x128xf32>
    %382 = vector.broadcast %381 : vector<1x128xf32> to vector<16x128xf32>
    %383 = arith.mulf %382, %378 : vector<16x128xf32>
    %384 = arith.addf %377, %383 : vector<16x128xf32>
    %c1_i32_119 = arith.constant 1 : i32
    %385 = tpu.dynamic_rotate %358 by %c1_i32_119 dim 1 : vector<16x128xf32>, i32 -> vector<16x128xf32>
    %c12_120 = arith.constant 12 : index
    %c0_121 = arith.constant 0 : index
    %386 = vector.load %arg3[%c12_120, %c0_121] : memref<36x128xf32, #tpu.memory_space<vmem>>, vector<1x128xf32>
    %387 = vector.shape_cast %386 : vector<1x128xf32> to vector<128xf32>
    %388 = vector.shape_cast %387 : vector<128xf32> to vector<1x128xf32>
    %389 = vector.broadcast %388 : vector<1x128xf32> to vector<16x128xf32>
    %390 = arith.mulf %389, %385 : vector<16x128xf32>
    %391 = arith.addf %384, %390 : vector<16x128xf32>
    %c13_122 = arith.constant 13 : index
    %c0_123 = arith.constant 0 : index
    %392 = vector.load %arg3[%c13_122, %c0_123] : memref<36x128xf32, #tpu.memory_space<vmem>>, vector<1x128xf32>
    %393 = vector.shape_cast %392 : vector<1x128xf32> to vector<128xf32>
    %394 = vector.shape_cast %393 : vector<128xf32> to vector<1x128xf32>
    %395 = vector.broadcast %394 : vector<1x128xf32> to vector<16x128xf32>
    %396 = arith.mulf %395, %358 : vector<16x128xf32>
    %397 = arith.addf %391, %396 : vector<16x128xf32>
    %c127_i32_124 = arith.constant 127 : i32
    %398 = tpu.dynamic_rotate %358 by %c127_i32_124 dim 1 : vector<16x128xf32>, i32 -> vector<16x128xf32>
    %c14_125 = arith.constant 14 : index
    %c0_126 = arith.constant 0 : index
    %399 = vector.load %arg3[%c14_125, %c0_126] : memref<36x128xf32, #tpu.memory_space<vmem>>, vector<1x128xf32>
    %400 = vector.shape_cast %399 : vector<1x128xf32> to vector<128xf32>
    %401 = vector.shape_cast %400 : vector<128xf32> to vector<1x128xf32>
    %402 = vector.broadcast %401 : vector<1x128xf32> to vector<16x128xf32>
    %403 = arith.mulf %402, %398 : vector<16x128xf32>
    %404 = arith.addf %397, %403 : vector<16x128xf32>
    %c1_i32_127 = arith.constant 1 : i32
    %405 = tpu.dynamic_rotate %364 by %c1_i32_127 dim 1 : vector<16x128xf32>, i32 -> vector<16x128xf32>
    %c15_128 = arith.constant 15 : index
    %c0_129 = arith.constant 0 : index
    %406 = vector.load %arg3[%c15_128, %c0_129] : memref<36x128xf32, #tpu.memory_space<vmem>>, vector<1x128xf32>
    %407 = vector.shape_cast %406 : vector<1x128xf32> to vector<128xf32>
    %408 = vector.shape_cast %407 : vector<128xf32> to vector<1x128xf32>
    %409 = vector.broadcast %408 : vector<1x128xf32> to vector<16x128xf32>
    %410 = arith.mulf %409, %405 : vector<16x128xf32>
    %411 = arith.addf %404, %410 : vector<16x128xf32>
    %c16_130 = arith.constant 16 : index
    %c0_131 = arith.constant 0 : index
    %412 = vector.load %arg3[%c16_130, %c0_131] : memref<36x128xf32, #tpu.memory_space<vmem>>, vector<1x128xf32>
    %413 = vector.shape_cast %412 : vector<1x128xf32> to vector<128xf32>
    %414 = vector.shape_cast %413 : vector<128xf32> to vector<1x128xf32>
    %415 = vector.broadcast %414 : vector<1x128xf32> to vector<16x128xf32>
    %416 = arith.mulf %415, %364 : vector<16x128xf32>
    %417 = arith.addf %411, %416 : vector<16x128xf32>
    %c127_i32_132 = arith.constant 127 : i32
    %418 = tpu.dynamic_rotate %364 by %c127_i32_132 dim 1 : vector<16x128xf32>, i32 -> vector<16x128xf32>
    %c17_133 = arith.constant 17 : index
    %c0_134 = arith.constant 0 : index
    %419 = vector.load %arg3[%c17_133, %c0_134] : memref<36x128xf32, #tpu.memory_space<vmem>>, vector<1x128xf32>
    %420 = vector.shape_cast %419 : vector<1x128xf32> to vector<128xf32>
    %421 = vector.shape_cast %420 : vector<128xf32> to vector<1x128xf32>
    %422 = vector.broadcast %421 : vector<1x128xf32> to vector<16x128xf32>
    %423 = arith.mulf %422, %418 : vector<16x128xf32>
    %424 = arith.addf %417, %423 : vector<16x128xf32>
    %425 = vector.extract_strided_slice %287 {offsets = [0, 32], sizes = [16, 16], strides = [1, 1]} : vector<16x64xf32> to vector<16x16xf32>
    %426 = tpu.concatenate %425, %425, %425, %425, %425, %425, %425, %425 in 1 : vector<16x16xf32>, vector<16x16xf32>, vector<16x16xf32>, vector<16x16xf32>, vector<16x16xf32>, vector<16x16xf32>, vector<16x16xf32>, vector<16x16xf32> -> vector<16x128xf32>
    %c1_i32_135 = arith.constant 1 : i32
    %427 = tpu.dynamic_rotate %426 by %c1_i32_135 dim 0 : vector<16x128xf32>, i32 -> vector<16x128xf32>
    %428 = vector.broadcast %4 : vector<16x1xf32> to vector<16x128xf32>
    %429 = arith.mulf %427, %428 : vector<16x128xf32>
    %c15_i32_136 = arith.constant 15 : i32
    %430 = tpu.dynamic_rotate %426 by %c15_i32_136 dim 0 : vector<16x128xf32>, i32 -> vector<16x128xf32>
    %431 = vector.broadcast %8 : vector<16x1xf32> to vector<16x128xf32>
    %432 = arith.mulf %430, %431 : vector<16x128xf32>
    %c1_i32_137 = arith.constant 1 : i32
    %433 = tpu.dynamic_rotate %429 by %c1_i32_137 dim 1 : vector<16x128xf32>, i32 -> vector<16x128xf32>
    %c18_138 = arith.constant 18 : index
    %c0_139 = arith.constant 0 : index
    %434 = vector.load %arg3[%c18_138, %c0_139] : memref<36x128xf32, #tpu.memory_space<vmem>>, vector<1x128xf32>
    %435 = vector.shape_cast %434 : vector<1x128xf32> to vector<128xf32>
    %436 = vector.shape_cast %435 : vector<128xf32> to vector<1x128xf32>
    %437 = vector.broadcast %436 : vector<1x128xf32> to vector<16x128xf32>
    %438 = arith.mulf %437, %433 : vector<16x128xf32>
    %439 = arith.addf %424, %438 : vector<16x128xf32>
    %c19_140 = arith.constant 19 : index
    %c0_141 = arith.constant 0 : index
    %440 = vector.load %arg3[%c19_140, %c0_141] : memref<36x128xf32, #tpu.memory_space<vmem>>, vector<1x128xf32>
    %441 = vector.shape_cast %440 : vector<1x128xf32> to vector<128xf32>
    %442 = vector.shape_cast %441 : vector<128xf32> to vector<1x128xf32>
    %443 = vector.broadcast %442 : vector<1x128xf32> to vector<16x128xf32>
    %444 = arith.mulf %443, %429 : vector<16x128xf32>
    %445 = arith.addf %439, %444 : vector<16x128xf32>
    %c127_i32_142 = arith.constant 127 : i32
    %446 = tpu.dynamic_rotate %429 by %c127_i32_142 dim 1 : vector<16x128xf32>, i32 -> vector<16x128xf32>
    %c20_143 = arith.constant 20 : index
    %c0_144 = arith.constant 0 : index
    %447 = vector.load %arg3[%c20_143, %c0_144] : memref<36x128xf32, #tpu.memory_space<vmem>>, vector<1x128xf32>
    %448 = vector.shape_cast %447 : vector<1x128xf32> to vector<128xf32>
    %449 = vector.shape_cast %448 : vector<128xf32> to vector<1x128xf32>
    %450 = vector.broadcast %449 : vector<1x128xf32> to vector<16x128xf32>
    %451 = arith.mulf %450, %446 : vector<16x128xf32>
    %452 = arith.addf %445, %451 : vector<16x128xf32>
    %c1_i32_145 = arith.constant 1 : i32
    %453 = tpu.dynamic_rotate %426 by %c1_i32_145 dim 1 : vector<16x128xf32>, i32 -> vector<16x128xf32>
    %c21_146 = arith.constant 21 : index
    %c0_147 = arith.constant 0 : index
    %454 = vector.load %arg3[%c21_146, %c0_147] : memref<36x128xf32, #tpu.memory_space<vmem>>, vector<1x128xf32>
    %455 = vector.shape_cast %454 : vector<1x128xf32> to vector<128xf32>
    %456 = vector.shape_cast %455 : vector<128xf32> to vector<1x128xf32>
    %457 = vector.broadcast %456 : vector<1x128xf32> to vector<16x128xf32>
    %458 = arith.mulf %457, %453 : vector<16x128xf32>
    %459 = arith.addf %452, %458 : vector<16x128xf32>
    %c22_148 = arith.constant 22 : index
    %c0_149 = arith.constant 0 : index
    %460 = vector.load %arg3[%c22_148, %c0_149] : memref<36x128xf32, #tpu.memory_space<vmem>>, vector<1x128xf32>
    %461 = vector.shape_cast %460 : vector<1x128xf32> to vector<128xf32>
    %462 = vector.shape_cast %461 : vector<128xf32> to vector<1x128xf32>
    %463 = vector.broadcast %462 : vector<1x128xf32> to vector<16x128xf32>
    %464 = arith.mulf %463, %426 : vector<16x128xf32>
    %465 = arith.addf %459, %464 : vector<16x128xf32>
    %c127_i32_150 = arith.constant 127 : i32
    %466 = tpu.dynamic_rotate %426 by %c127_i32_150 dim 1 : vector<16x128xf32>, i32 -> vector<16x128xf32>
    %c23_151 = arith.constant 23 : index
    %c0_152 = arith.constant 0 : index
    %467 = vector.load %arg3[%c23_151, %c0_152] : memref<36x128xf32, #tpu.memory_space<vmem>>, vector<1x128xf32>
    %468 = vector.shape_cast %467 : vector<1x128xf32> to vector<128xf32>
    %469 = vector.shape_cast %468 : vector<128xf32> to vector<1x128xf32>
    %470 = vector.broadcast %469 : vector<1x128xf32> to vector<16x128xf32>
    %471 = arith.mulf %470, %466 : vector<16x128xf32>
    %472 = arith.addf %465, %471 : vector<16x128xf32>
    %c1_i32_153 = arith.constant 1 : i32
    %473 = tpu.dynamic_rotate %432 by %c1_i32_153 dim 1 : vector<16x128xf32>, i32 -> vector<16x128xf32>
    %c24_154 = arith.constant 24 : index
    %c0_155 = arith.constant 0 : index
    %474 = vector.load %arg3[%c24_154, %c0_155] : memref<36x128xf32, #tpu.memory_space<vmem>>, vector<1x128xf32>
    %475 = vector.shape_cast %474 : vector<1x128xf32> to vector<128xf32>
    %476 = vector.shape_cast %475 : vector<128xf32> to vector<1x128xf32>
    %477 = vector.broadcast %476 : vector<1x128xf32> to vector<16x128xf32>
    %478 = arith.mulf %477, %473 : vector<16x128xf32>
    %479 = arith.addf %472, %478 : vector<16x128xf32>
    %c25_156 = arith.constant 25 : index
    %c0_157 = arith.constant 0 : index
    %480 = vector.load %arg3[%c25_156, %c0_157] : memref<36x128xf32, #tpu.memory_space<vmem>>, vector<1x128xf32>
    %481 = vector.shape_cast %480 : vector<1x128xf32> to vector<128xf32>
    %482 = vector.shape_cast %481 : vector<128xf32> to vector<1x128xf32>
    %483 = vector.broadcast %482 : vector<1x128xf32> to vector<16x128xf32>
    %484 = arith.mulf %483, %432 : vector<16x128xf32>
    %485 = arith.addf %479, %484 : vector<16x128xf32>
    %c127_i32_158 = arith.constant 127 : i32
    %486 = tpu.dynamic_rotate %432 by %c127_i32_158 dim 1 : vector<16x128xf32>, i32 -> vector<16x128xf32>
    %c26_159 = arith.constant 26 : index
    %c0_160 = arith.constant 0 : index
    %487 = vector.load %arg3[%c26_159, %c0_160] : memref<36x128xf32, #tpu.memory_space<vmem>>, vector<1x128xf32>
    %488 = vector.shape_cast %487 : vector<1x128xf32> to vector<128xf32>
    %489 = vector.shape_cast %488 : vector<128xf32> to vector<1x128xf32>
    %490 = vector.broadcast %489 : vector<1x128xf32> to vector<16x128xf32>
    %491 = arith.mulf %490, %486 : vector<16x128xf32>
    %492 = arith.addf %485, %491 : vector<16x128xf32>
    %493 = vector.extract_strided_slice %287 {offsets = [0, 48], sizes = [16, 16], strides = [1, 1]} : vector<16x64xf32> to vector<16x16xf32>
    %494 = tpu.concatenate %493, %493, %493, %493, %493, %493, %493, %493 in 1 : vector<16x16xf32>, vector<16x16xf32>, vector<16x16xf32>, vector<16x16xf32>, vector<16x16xf32>, vector<16x16xf32>, vector<16x16xf32>, vector<16x16xf32> -> vector<16x128xf32>
    %c1_i32_161 = arith.constant 1 : i32
    %495 = tpu.dynamic_rotate %494 by %c1_i32_161 dim 0 : vector<16x128xf32>, i32 -> vector<16x128xf32>
    %496 = vector.broadcast %4 : vector<16x1xf32> to vector<16x128xf32>
    %497 = arith.mulf %495, %496 : vector<16x128xf32>
    %c15_i32_162 = arith.constant 15 : i32
    %498 = tpu.dynamic_rotate %494 by %c15_i32_162 dim 0 : vector<16x128xf32>, i32 -> vector<16x128xf32>
    %499 = vector.broadcast %8 : vector<16x1xf32> to vector<16x128xf32>
    %500 = arith.mulf %498, %499 : vector<16x128xf32>
    %c1_i32_163 = arith.constant 1 : i32
    %501 = tpu.dynamic_rotate %497 by %c1_i32_163 dim 1 : vector<16x128xf32>, i32 -> vector<16x128xf32>
    %c27_164 = arith.constant 27 : index
    %c0_165 = arith.constant 0 : index
    %502 = vector.load %arg3[%c27_164, %c0_165] : memref<36x128xf32, #tpu.memory_space<vmem>>, vector<1x128xf32>
    %503 = vector.shape_cast %502 : vector<1x128xf32> to vector<128xf32>
    %504 = vector.shape_cast %503 : vector<128xf32> to vector<1x128xf32>
    %505 = vector.broadcast %504 : vector<1x128xf32> to vector<16x128xf32>
    %506 = arith.mulf %505, %501 : vector<16x128xf32>
    %507 = arith.addf %492, %506 : vector<16x128xf32>
    %c28_166 = arith.constant 28 : index
    %c0_167 = arith.constant 0 : index
    %508 = vector.load %arg3[%c28_166, %c0_167] : memref<36x128xf32, #tpu.memory_space<vmem>>, vector<1x128xf32>
    %509 = vector.shape_cast %508 : vector<1x128xf32> to vector<128xf32>
    %510 = vector.shape_cast %509 : vector<128xf32> to vector<1x128xf32>
    %511 = vector.broadcast %510 : vector<1x128xf32> to vector<16x128xf32>
    %512 = arith.mulf %511, %497 : vector<16x128xf32>
    %513 = arith.addf %507, %512 : vector<16x128xf32>
    %c127_i32_168 = arith.constant 127 : i32
    %514 = tpu.dynamic_rotate %497 by %c127_i32_168 dim 1 : vector<16x128xf32>, i32 -> vector<16x128xf32>
    %c29_169 = arith.constant 29 : index
    %c0_170 = arith.constant 0 : index
    %515 = vector.load %arg3[%c29_169, %c0_170] : memref<36x128xf32, #tpu.memory_space<vmem>>, vector<1x128xf32>
    %516 = vector.shape_cast %515 : vector<1x128xf32> to vector<128xf32>
    %517 = vector.shape_cast %516 : vector<128xf32> to vector<1x128xf32>
    %518 = vector.broadcast %517 : vector<1x128xf32> to vector<16x128xf32>
    %519 = arith.mulf %518, %514 : vector<16x128xf32>
    %520 = arith.addf %513, %519 : vector<16x128xf32>
    %c1_i32_171 = arith.constant 1 : i32
    %521 = tpu.dynamic_rotate %494 by %c1_i32_171 dim 1 : vector<16x128xf32>, i32 -> vector<16x128xf32>
    %c30_172 = arith.constant 30 : index
    %c0_173 = arith.constant 0 : index
    %522 = vector.load %arg3[%c30_172, %c0_173] : memref<36x128xf32, #tpu.memory_space<vmem>>, vector<1x128xf32>
    %523 = vector.shape_cast %522 : vector<1x128xf32> to vector<128xf32>
    %524 = vector.shape_cast %523 : vector<128xf32> to vector<1x128xf32>
    %525 = vector.broadcast %524 : vector<1x128xf32> to vector<16x128xf32>
    %526 = arith.mulf %525, %521 : vector<16x128xf32>
    %527 = arith.addf %520, %526 : vector<16x128xf32>
    %c31_174 = arith.constant 31 : index
    %c0_175 = arith.constant 0 : index
    %528 = vector.load %arg3[%c31_174, %c0_175] : memref<36x128xf32, #tpu.memory_space<vmem>>, vector<1x128xf32>
    %529 = vector.shape_cast %528 : vector<1x128xf32> to vector<128xf32>
    %530 = vector.shape_cast %529 : vector<128xf32> to vector<1x128xf32>
    %531 = vector.broadcast %530 : vector<1x128xf32> to vector<16x128xf32>
    %532 = arith.mulf %531, %494 : vector<16x128xf32>
    %533 = arith.addf %527, %532 : vector<16x128xf32>
    %c127_i32_176 = arith.constant 127 : i32
    %534 = tpu.dynamic_rotate %494 by %c127_i32_176 dim 1 : vector<16x128xf32>, i32 -> vector<16x128xf32>
    %c32_177 = arith.constant 32 : index
    %c0_178 = arith.constant 0 : index
    %535 = vector.load %arg3[%c32_177, %c0_178] : memref<36x128xf32, #tpu.memory_space<vmem>>, vector<1x128xf32>
    %536 = vector.shape_cast %535 : vector<1x128xf32> to vector<128xf32>
    %537 = vector.shape_cast %536 : vector<128xf32> to vector<1x128xf32>
    %538 = vector.broadcast %537 : vector<1x128xf32> to vector<16x128xf32>
    %539 = arith.mulf %538, %534 : vector<16x128xf32>
    %540 = arith.addf %533, %539 : vector<16x128xf32>
    %c1_i32_179 = arith.constant 1 : i32
    %541 = tpu.dynamic_rotate %500 by %c1_i32_179 dim 1 : vector<16x128xf32>, i32 -> vector<16x128xf32>
    %c33_180 = arith.constant 33 : index
    %c0_181 = arith.constant 0 : index
    %542 = vector.load %arg3[%c33_180, %c0_181] : memref<36x128xf32, #tpu.memory_space<vmem>>, vector<1x128xf32>
    %543 = vector.shape_cast %542 : vector<1x128xf32> to vector<128xf32>
    %544 = vector.shape_cast %543 : vector<128xf32> to vector<1x128xf32>
    %545 = vector.broadcast %544 : vector<1x128xf32> to vector<16x128xf32>
    %546 = arith.mulf %545, %541 : vector<16x128xf32>
    %547 = arith.addf %540, %546 : vector<16x128xf32>
    %c34_182 = arith.constant 34 : index
    %c0_183 = arith.constant 0 : index
    %548 = vector.load %arg3[%c34_182, %c0_183] : memref<36x128xf32, #tpu.memory_space<vmem>>, vector<1x128xf32>
    %549 = vector.shape_cast %548 : vector<1x128xf32> to vector<128xf32>
    %550 = vector.shape_cast %549 : vector<128xf32> to vector<1x128xf32>
    %551 = vector.broadcast %550 : vector<1x128xf32> to vector<16x128xf32>
    %552 = arith.mulf %551, %500 : vector<16x128xf32>
    %553 = arith.addf %547, %552 : vector<16x128xf32>
    %c127_i32_184 = arith.constant 127 : i32
    %554 = tpu.dynamic_rotate %500 by %c127_i32_184 dim 1 : vector<16x128xf32>, i32 -> vector<16x128xf32>
    %c35_185 = arith.constant 35 : index
    %c0_186 = arith.constant 0 : index
    %555 = vector.load %arg3[%c35_185, %c0_186] : memref<36x128xf32, #tpu.memory_space<vmem>>, vector<1x128xf32>
    %556 = vector.shape_cast %555 : vector<1x128xf32> to vector<128xf32>
    %557 = vector.shape_cast %556 : vector<128xf32> to vector<1x128xf32>
    %558 = vector.broadcast %557 : vector<1x128xf32> to vector<16x128xf32>
    %559 = arith.mulf %558, %554 : vector<16x128xf32>
    %560 = arith.addf %553, %559 : vector<16x128xf32>
    %c0_187 = arith.constant 0 : index
    %c0_188 = arith.constant 0 : index
    %c0_189 = arith.constant 0 : index
    %561 = vector.load %arg4[%c0_187, %c0_188, %c0_189] : memref<1x16x128xf32, #tpu.memory_space<vmem>>, vector<1x16x128xf32>
    %562 = vector.shape_cast %561 : vector<1x16x128xf32> to vector<16x128xf32>
    %563 = vector.shape_cast %560 : vector<16x128xf32> to vector<1x16x128xf32>
    tpu.vector_store %arg4[%c0_187, %c0_188, %c0_189], %563 {strides = array<i32>} : memref<1x16x128xf32, #tpu.memory_space<vmem>>, vector<1x16x128xf32>,
    return
  }
  func.func @transform_0(%arg0: i32) -> (i32, i32, i32, i32) {
    %c0_i32 = arith.constant 0 : i32
    %c0_i32_0 = arith.constant 0 : i32
    %c0_i32_1 = arith.constant 0 : i32
    %c0_i32_2 = arith.constant 0 : i32
    return %arg0, %c0_i32, %c0_i32_0, %c0_i32_1 : i32, i32, i32, i32
  }
  func.func @transform_1(%arg0: i32) -> (i32, i32) {
    %c0_i32 = arith.constant 0 : i32
    %c0_i32_0 = arith.constant 0 : i32
    %c0_i32_1 = arith.constant 0 : i32
    return %c0_i32, %c0_i32_0 : i32, i32
  }
  func.func @transform_2(%arg0: i32) -> (i32, i32) {
    %c0_i32 = arith.constant 0 : i32
    %c0_i32_0 = arith.constant 0 : i32
    %c0_i32_1 = arith.constant 0 : i32
    return %c0_i32, %c0_i32_0 : i32, i32
  }
  func.func @transform_3(%arg0: i32) -> (i32, i32, i32) {
    %c0_i32 = arith.constant 0 : i32
    %c0_i32_0 = arith.constant 0 : i32
    %c0_i32_1 = arith.constant 0 : i32
    return %arg0, %c0_i32, %c0_i32_0 : i32, i32, i32
  }
}

</mosaic_0001>

<llo_original>
// kernel: tpu_custom_call.1
$region0: #{tpu_custom_call.1}
  #allocation0 [shape = 'u32[]', space=smem, size = 0x4, offset = 0x4, fixed_abs, tag = 'smem constant byte address 0x4 - core index']
  #allocation1 [shape = 'u32[144,128]{1,0:T(1,128)}', space=vmem, size = 0x12000, scoped, tag = 'internal scratch']
  %s0 = inlined_call_operand.hbm [shape: f32[2,4,16,16], index: 0, kind: input, shape index: {}]
  %s1 = inlined_call_operand.hbm [shape: f32[36,64], index: 1, kind: input, shape index: {}]
  %s2 = inlined_call_operand.hbm [shape: f32[36,128], index: 2, kind: input, shape index: {}]
  %s3 = inlined_call_operand.hbm [shape: f32[2,16,128], index: 3, kind: output, shape index: {}]
  %s4 = sld [smem:[#allocation0]]
  $region57: #{tpu_custom_call.1} parent=0
    _
  %s6 = ssub.s32 1, %s4
  %s7 = scalar_select 0, %s6, %s4
  $region1: #{tpu_custom_call.1} parent=0
    #allocation2 [shape = 'u8[65536]{0}', space=vmem, size = 0x10000, scoped, tag = 'input window, operand 0']
    #allocation3 [shape = 's32[2]{0}', space=sflag, size = 0x8, scoped, tag = 'scoped memory for tpu_custom_call.1']
    #allocation4 [shape = 's32[2]{0}', space=sflag, size = 0x8, scoped, tag = 'scoped memory for tpu_custom_call.1']
    #allocation5 [shape = 'u8[20480]{0}', space=vmem, size = 0x5000, scoped, tag = 'input window, operand 1, single buffered']
    #allocation6 [shape = 's32[1]{0}', space=sflag, size = 0x4, scoped, tag = 'scoped memory for tpu_custom_call.1']
    #allocation7 [shape = 'u8[20480]{0}', space=vmem, size = 0x5000, scoped, tag = 'input window, operand 2, single buffered']
    #allocation8 [shape = 'u8[16384]{0}', space=vmem, size = 0x4000, scoped, tag = 'output window, operand 0']
    %8 = vsyncpa [#allocation3], 0
    %s9 = scalar_lea.sflag [#allocation3], 1
    %10 = vsyncpa %s9, 0
    %11 = vsyncpa [#allocation6], 0
    %12 = vsyncpa [#allocation4], 0
    %s13 = scalar_lea.sflag [#allocation4], 1
    %14 = vsyncpa %s13, 0
    loop: start=0, step=1, limit=4
    $region2: #{tpu_custom_call.1} parent=1 // loop_pre_header
      _
    $region3: #{tpu_custom_call.1} parent=1 // loop_header
      %s16 = sphi 0, %s20
      %p17 = scmp.ge.s32.totalorder %s16, 4
      %s26 = sphi 0, %s28
      %s29 = sphi 0, %s26
      %s30 = sphi 0, %s29
      %s46 = sphi 0, %s30
      %s50 = sphi 0, %s50
      %s52 = sphi 0, %s50
      %s53 = sphi 0, %s52
      %s67 = sphi 0, %s53
      %s71 = sphi 0, %s71
      %s73 = sphi 0, %s71
      %s74 = sphi 0, %s73
      %s88 = sphi 0, %s74
      %s94 = sphi 0, %s96
      %s97 = sphi 0, %s94
      %s98 = sphi 0, %s97
      %s114 = sphi 0, %s98
    $region4: #{tpu_custom_call.1} parent=1 // loop_header_branch
      %19 = sbr.rel (%p17) target = $region8
    $region5: #{tpu_custom_call.1} parent=1 // loop_body
      %s21 = ssub.s32 %s16, 1
      %s22 = ssub.s32 %s16, 2
      %s23 = sadd.s32 %s16, 1
      %s24 = ssub.s32 %s16, %s23
      %p25 = scmp.eq.s32.totalorder %s24, 0
      %s27 = sadd.s32 %s26, 1
      %s28 = scalar_select %p25, %s26, %s27
      %p31 = pneg %p25
      %p32 = scmp.eq.s32.totalorder %s16, 1
      %p33 = por %p31, %p32
      %p34 = scmp.ne.s32.totalorder %s26, %s29
      %p35 = scmp.eq.s32.totalorder %s16, 0
      %p36 = por %p34, %p35
      %p37 = scmp.ne.s32.totalorder %s26, %s29
      %p38 = scmp.eq.s32.totalorder %s21, 1
      %p39 = por %p37, %p38
      %p40 = scmp.ne.s32.totalorder %s29, %s30
      %p41 = scmp.eq.s32.totalorder %s21, 0
      %p42 = por %p40, %p41
      %p43 = scmp.ne.s32.totalorder %s29, %s30
      %p44 = scmp.eq.s32.totalorder %s22, 1
      %p45 = por %p43, %p44
      %p47 = scmp.ne.s32.totalorder %s30, %s46
      %p48 = scmp.eq.s32.totalorder %s22, 0
      %p49 = por %p47, %p48
      %s51 = sadd.s32 %s50, 1
      %p54 = scmp.eq.s32.totalorder %s16, 1
      %p55 = scmp.ne.s32.totalorder %s50, %s52
      %p56 = scmp.eq.s32.totalorder %s16, 0
      %p57 = por %p55, %p56
      %p58 = scmp.ne.s32.totalorder %s50, %s52
      %p59 = scmp.eq.s32.totalorder %s21, 1
      %p60 = por %p58, %p59
      %p61 = scmp.ne.s32.totalorder %s52, %s53
      %p62 = scmp.eq.s32.totalorder %s21, 0
      %p63 = por %p61, %p62
      %p64 = scmp.ne.s32.totalorder %s52, %s53
      %p65 = scmp.eq.s32.totalorder %s22, 1
      %p66 = por %p64, %p65
      %p68 = scmp.ne.s32.totalorder %s53, %s67
      %p69 = scmp.eq.s32.totalorder %s22, 0
      %p70 = por %p68, %p69
      %s72 = sadd.s32 %s71, 1
      %p75 = scmp.eq.s32.totalorder %s16, 1
      %p76 = scmp.ne.s32.totalorder %s71, %s73
      %p77 = scmp.eq.s32.totalorder %s16, 0
      %p78 = por %p76, %p77
      %p79 = scmp.ne.s32.totalorder %s71, %s73
      %p80 = scmp.eq.s32.totalorder %s21, 1
      %p81 = por %p79, %p80
      %p82 = scmp.ne.s32.totalorder %s73, %s74
      %p83 = scmp.eq.s32.totalorder %s21, 0
      %p84 = por %p82, %p83
      %p85 = scmp.ne.s32.totalorder %s73, %s74
      %p86 = scmp.eq.s32.totalorder %s22, 1
      %p87 = por %p85, %p86
      %p89 = scmp.ne.s32.totalorder %s74, %s88
      %p90 = scmp.eq.s32.totalorder %s22, 0
      %p91 = por %p89, %p90
      %s92 = ssub.s32 %s16, %s23
      %p93 = scmp.eq.s32.totalorder %s92, 0
      %s95 = sadd.s32 %s94, 1
      %s96 = scalar_select %p93, %s94, %s95
      %p99 = pneg %p93
      %p100 = scmp.eq.s32.totalorder %s16, 1
      %p101 = por %p99, %p100
      %p102 = scmp.ne.s32.totalorder %s94, %s97
      %p103 = scmp.eq.s32.totalorder %s16, 0
      %p104 = por %p102, %p103
      %p105 = scmp.ne.s32.totalorder %s94, %s97
      %p106 = scmp.eq.s32.totalorder %s21, 1
      %p107 = por %p105, %p106
      %p108 = scmp.ne.s32.totalorder %s97, %s98
      %p109 = scmp.eq.s32.totalorder %s21, 0
      %p110 = por %p108, %p109
      %p111 = scmp.ne.s32.totalorder %s97, %s98
      %p112 = scmp.eq.s32.totalorder %s22, 1
      %p113 = por %p111, %p112
      %p115 = scmp.ne.s32.totalorder %s98, %s114
      %p116 = scmp.eq.s32.totalorder %s22, 0
      %p117 = por %p115, %p116
      %p118 = scmp.le.s32.totalorder 1, %s16
      %p119 = scmp.lt.s32.totalorder %s16, 3
      %p120 = pnand %p118, %p119
      %p121 = pneg %p120
      // Predicated region
      $region9: #{tpu_custom_call.1} parent=5 // pred_check
        _
      $region10: #{tpu_custom_call.1} parent=5 // pred_check_branch
        %123 = sbr.rel (%p120) target = $region12
      $region11: #{tpu_custom_call.1} parent=5 // pred_region
        %s124 = ssub.s32 %s16, 1
        // Predicated region
        $region13: #{tpu_custom_call.1} parent=11 // pred_check
          %p125 = pneg %p63
        $region14: #{tpu_custom_call.1} parent=11 // pred_check_branch
          %127 = sbr.rel (%p125) target = $region16
        $region15: #{tpu_custom_call.1} parent=11 // pred_region
          %s129 = ssub.s32 640, 640
          %130 = vsyncadd [#allocation6], %s129
          %s131 = sshll.u32 [#allocation5], 4
          %s132 = int_to_ptr.vmem [resolvable:$true] %s131
          %137 = dma.hbm_to_vmem [thread:$0]  %s1, 640, %s132, [#allocation6], 128, 128, 8
        $region16: #{tpu_custom_call.1} parent=11 // pred_fallthru
          _
        // Predicated region
        $region17: #{tpu_custom_call.1} parent=11 // pred_check
          %p138 = pneg %p84
        $region18: #{tpu_custom_call.1} parent=11 // pred_check_branch
          %140 = sbr.rel (%p138) target = $region20
        $region19: #{tpu_custom_call.1} parent=11 // pred_region
          %s142 = ssub.s32 640, 640
          %143 = vsyncadd [#allocation6], %s142
          %s144 = sshll.u32 [#allocation7], 4
          %s145 = int_to_ptr.vmem [resolvable:$true] %s144
          %150 = dma.hbm_to_vmem [thread:$0]  %s2, 640, %s145, [#allocation6], 128, 128, 8
        $region20: #{tpu_custom_call.1} parent=11 // pred_fallthru
          _
      $region12: #{tpu_custom_call.1} parent=5 // pred_fallthru
        _
      %p151 = scmp.lt.s32.totalorder %s16, 2
      // Predicated region
      $region21: #{tpu_custom_call.1} parent=5 // pred_check
        %p152 = pneg %p151
      $region22: #{tpu_custom_call.1} parent=5 // pred_check_branch
        %154 = sbr.rel (%p152) target = $region24
      $region23: #{tpu_custom_call.1} parent=5 // pred_region
        // Predicated region
        $region25: #{tpu_custom_call.1} parent=23 // pred_check
          %p155 = pneg %p36
        $region26: #{tpu_custom_call.1} parent=23 // pred_check_branch
          %157 = sbr.rel (%p155) target = $region28
        $region27: #{tpu_custom_call.1} parent=23 // pred_region
          %s158 = sand.u32 %s26, 1
          %s159 = scalar_lea.sflag [#allocation3], %s158
          %s160 = sand.u32 %s26, 1
          %s161 = smul.addr %s160, 64
          %s162 = scalar_lea.vmem [#allocation2], %s161
          %s164 = ssub.s32 1024, 1024
          %165 = vsyncadd %s159, %s164
          %s166 = smul.addr %s16, 8
          %s167 = smul.addr %s166, 128
          %s168 = scalar_lea.hbm %s0, %s167
          %s169 = sshll.u32 %s162, 4
          %s170 = int_to_ptr.vmem [resolvable:$true] %s169
          %175 = dma.hbm_to_vmem [thread:$0]  %s168, 1024, %s170, %s159, 128, 128, 8
        $region28: #{tpu_custom_call.1} parent=23 // pred_fallthru
          _
      $region24: #{tpu_custom_call.1} parent=5 // pred_fallthru
        _
      %p176 = scmp.le.s32.totalorder 1, %s16
      %p177 = scmp.lt.s32.totalorder %s16, 3
      %p178 = pnand %p176, %p177
      %p179 = pneg %p178
      // Predicated region
      $region29: #{tpu_custom_call.1} parent=5 // pred_check
        _
      $region30: #{tpu_custom_call.1} parent=5 // pred_check_branch
        %181 = sbr.rel (%p178) target = $region32
      $region31: #{tpu_custom_call.1} parent=5 // pred_region
        %s182 = ssub.s32 %s16, 1
        %s183 = sand.u32 %s29, 1
        %s184 = scalar_lea.sflag [#allocation3], %s183
        %s185 = sand.u32 %s29, 1
        %s186 = smul.addr %s185, 64
        %s187 = scalar_lea.vmem [#allocation2], %s186
        // Predicated region
        $region33: #{tpu_custom_call.1} parent=31 // pred_check
          %p188 = pneg %p42
        $region34: #{tpu_custom_call.1} parent=31 // pred_check_branch
          %190 = sbr.rel (%p188) target = $region36
        $region35: #{tpu_custom_call.1} parent=31 // pred_region
          %191 = dma.done %s184, 1024
        $region36: #{tpu_custom_call.1} parent=31 // pred_fallthru
          _
        // Predicated region
        $region37: #{tpu_custom_call.1} parent=31 // pred_check
          %p192 = pneg %p63
        $region38: #{tpu_custom_call.1} parent=31 // pred_check_branch
          %194 = sbr.rel (%p192) target = $region40
        $region39: #{tpu_custom_call.1} parent=31 // pred_region
          %195 = dma.done [#allocation6], 640
        $region40: #{tpu_custom_call.1} parent=31 // pred_fallthru
          _
        // Predicated region
        $region41: #{tpu_custom_call.1} parent=31 // pred_check
          %p196 = pneg %p84
        $region42: #{tpu_custom_call.1} parent=31 // pred_check_branch
          %198 = sbr.rel (%p196) target = $region44
        $region43: #{tpu_custom_call.1} parent=31 // pred_region
          %199 = dma.done [#allocation6], 640
        $region44: #{tpu_custom_call.1} parent=31 // pred_fallthru
          _
        %s200 = sand.u32 %s29, 1
        %s201 = scalar_lea.sflag [#allocation3], %s200
        %s202 = sand.u32 %s29, 1
        %s203 = smul.addr %s202, 64
        %s204 = scalar_lea.vmem [#allocation2], %s203
        %p205 = pneg %p42
        %p206 = pneg %p39
        %p207 = pneg %p63
        %p208 = pneg %p60
        %p209 = pneg %p84
        %p210 = pneg %p81
        %p211 = pneg %p110
        %p212 = pneg %p107
        %s213 = sand.u32 %s97, 1
        %s214 = scalar_lea.sflag [#allocation4], %s213
        %s215 = sand.u32 %s97, 1
        %s216 = smul.addr %s215, 16
        %s217 = scalar_lea.vmem [#allocation8], %s216
        %v218 = vlaneseq
        %v219 = vshrl.u32 %v218, 7
        %v220 = vadd.s32 %v219, 8
        %vm221 = vcmp.gt.s32.totalorder %v219, 0
        %vm222 = vcmp.gt.s32.totalorder %v220, 0
        %v223 = vsel %vm221, 1, 0
        %v224 = vsel %vm222, 1, 0
        %v225 = vcvt.s32.f32 %v223
        %v226 = vcvt.s32.f32 %v224
        %vm227 = vcmp.lt.s32.totalorder %v219, 15
        %vm228 = vcmp.lt.s32.totalorder %v220, 15
        %v229 = vsel %vm227, 1, 0
        %v230 = vsel %vm228, 1, 0
        %v231 = vcvt.s32.f32 %v229
        %v232 = vcvt.s32.f32 %v230
        %v233 = vld [vmem:[%s187] sm:$0xff]
        %v234 = vld [vmem:[%s187 + $0x8] sm:$0xff]
        %237 = vrot.lane.b32.xlu0 %v233, 16
        %v238 = vpop.permute.xlu0 %237
        %239 = vrot.lane.b32.xlu0 %v234, 16
        %v240 = vpop.permute.xlu0 %239
        %243 = vrot.lane.b32.xlu0 %v233, 32
        %v244 = vpop.permute.xlu0 %243
        %245 = vrot.lane.b32.xlu0 %v234, 32
        %v246 = vpop.permute.xlu0 %245
        %249 = vrot.lane.b32.xlu0 %v233, 48
        %v250 = vpop.permute.xlu0 %249
        %251 = vrot.lane.b32.xlu0 %v234, 48
        %v252 = vpop.permute.xlu0 %251
        %vm255 = vcmask 130048
        %v256 = vsel %vm255, %v233, %v238
        %v257 = vsel %vm255, %v234, %v240
        %vm258 = vcmask 261120
        %v259 = vsel %vm258, %v256, %v244
        %v260 = vsel %vm258, %v257, %v246
        %vm261 = vcmask 392192
        %v262 = vsel %vm261, %v259, %v250
        %v263 = vsel %vm261, %v260, %v252
        %v264 = vrot.slane %v262, 7
        %v265 = vrot.slane %v263, 7
        %vm266 = vcmp.lt.s32.totalorder %v219, 1
        %v267 = vsel %vm266, %v264, %v265
        %v268 = vsel %vm266, %v265, %v264
        %v269 = vmul.f32 %v268, %v225
        %v270 = vmul.f32 %v267, %v226
        %v271 = vrot.slane %v262, 1
        %v272 = vrot.slane %v263, 1
        %vm273 = vcmp.lt.s32.totalorder %v219, 7
        %v274 = vsel %vm273, %v271, %v272
        %v275 = vsel %vm273, %v272, %v271
        %v276 = vmul.f32 %v274, %v231
        %v277 = vmul.f32 %v275, %v232
        %vm278 = vcmask 1048064
        %279 = vrot.lane.b32.xlu0 %v269, 64
        %v280 = vpop.permute.xlu0 %279
        %v281 = vsel %vm278, %v280, %v269
        %282 = vrot.lane.b32.xlu0 %v270, 64
        %v283 = vpop.permute.xlu0 %282
        %v284 = vsel %vm278, %v283, %v270
        %285 = vrot.lane.b32.xlu0 %v281, 64
        %v286 = vpop.permute.xlu0 %285
        %287 = vrot.lane.b32.xlu0 %v284, 64
        %v288 = vpop.permute.xlu0 %287
        %v289 = vsel %vm278, %v286, %v269
        %v290 = vsel %vm278, %v288, %v270
        %v291 = vld [vmem:[#allocation5] sm:$0x1]
        %v292 = vlaneseq
        %v293 = vshrl.u32 %v292, 7
        %v294 = vsub.s32 0, %v293
        %v295 = vrot.slane %v291, %v294
        %298 = vrot.lane.b32.xlu0 %v289, 65
        %v299 = vpop.permute.xlu0 %298
        %300 = vrot.lane.b32.xlu0 %v290, 65
        %v301 = vpop.permute.xlu0 %300
        %v304 = vmul.f32 %v295, %v299
        %v305 = vmul.f32 %v295, %v301
        %v306 = vadd.f32 %v304, 0.0
        %v307 = vadd.f32 %v305, 0.0
        %v308 = vld [vmem:[#allocation5 + $0x1] sm:$0x1]
        %v309 = vlaneseq
        %v310 = vshrl.u32 %v309, 7
        %v311 = vsub.s32 0, %v310
        %v312 = vrot.slane %v308, %v311
        %v313 = vmul.f32 %v312, %v269
        %v314 = vmul.f32 %v312, %v270
        %v315 = vadd.f32 %v306, %v313
        %v316 = vadd.f32 %v307, %v314
        %v317 = vld [vmem:[#allocation5 + $0x2] sm:$0x1]
        %v318 = vlaneseq
        %v319 = vshrl.u32 %v318, 7
        %v320 = vsub.s32 0, %v319
        %v321 = vrot.slane %v317, %v320
        %322 = vrot.lane.b32.xlu0 %v289, 127
        %v323 = vpop.permute.xlu0 %322
        %324 = vrot.lane.b32.xlu0 %v290, 127
        %v325 = vpop.permute.xlu0 %324
        %v328 = vmul.f32 %v321, %v323
        %v329 = vmul.f32 %v321, %v325
        %v330 = vadd.f32 %v315, %v328
        %v331 = vadd.f32 %v316, %v329
        %332 = vrot.lane.b32.xlu0 %v262, 64
        %v333 = vpop.permute.xlu0 %332
        %v334 = vsel %vm278, %v333, %v262
        %335 = vrot.lane.b32.xlu0 %v263, 64
        %v336 = vpop.permute.xlu0 %335
        %v337 = vsel %vm278, %v336, %v263
        %338 = vrot.lane.b32.xlu0 %v334, 64
        %v339 = vpop.permute.xlu0 %338
        %340 = vrot.lane.b32.xlu0 %v337, 64
        %v341 = vpop.permute.xlu0 %340
        %v342 = vsel %vm278, %v339, %v262
        %v343 = vsel %vm278, %v341, %v263
        %v344 = vld [vmem:[#allocation5 + $0x3] sm:$0x1]
        %v345 = vlaneseq
        %v346 = vshrl.u32 %v345, 7
        %v347 = vsub.s32 0, %v346
        %v348 = vrot.slane %v344, %v347
        %351 = vrot.lane.b32.xlu0 %v342, 65
        %v352 = vpop.permute.xlu0 %351
        %353 = vrot.lane.b32.xlu0 %v343, 65
        %v354 = vpop.permute.xlu0 %353
        %v357 = vmul.f32 %v348, %v352
        %v358 = vmul.f32 %v348, %v354
        %v359 = vadd.f32 %v330, %v357
        %v360 = vadd.f32 %v331, %v358
        %v361 = vld [vmem:[#allocation5 + $0x4] sm:$0x1]
        %v362 = vlaneseq
        %v363 = vshrl.u32 %v362, 7
        %v364 = vsub.s32 0, %v363
        %v365 = vrot.slane %v361, %v364
        %v366 = vmul.f32 %v365, %v262
        %v367 = vmul.f32 %v365, %v263
        %v368 = vadd.f32 %v359, %v366
        %v369 = vadd.f32 %v360, %v367
        %v370 = vld [vmem:[#allocation5 + $0x5] sm:$0x1]
        %v371 = vlaneseq
        %v372 = vshrl.u32 %v371, 7
        %v373 = vsub.s32 0, %v372
        %v374 = vrot.slane %v370, %v373
        %375 = vrot.lane.b32.xlu0 %v342, 127
        %v376 = vpop.permute.xlu0 %375
        %377 = vrot.lane.b32.xlu0 %v343, 127
        %v378 = vpop.permute.xlu0 %377
        %v381 = vmul.f32 %v374, %v376
        %v382 = vmul.f32 %v374, %v378
        %v383 = vadd.f32 %v368, %v381
        %v384 = vadd.f32 %v369, %v382
        %385 = vrot.lane.b32.xlu0 %v276, 64
        %v386 = vpop.permute.xlu0 %385
        %v387 = vsel %vm278, %v386, %v276
        %388 = vrot.lane.b32.xlu0 %v277, 64
        %v389 = vpop.permute.xlu0 %388
        %v390 = vsel %vm278, %v389, %v277
        %391 = vrot.lane.b32.xlu0 %v387, 64
        %v392 = vpop.permute.xlu0 %391
        %393 = vrot.lane.b32.xlu0 %v390, 64
        %v394 = vpop.permute.xlu0 %393
        %v395 = vsel %vm278, %v392, %v276
        %v396 = vsel %vm278, %v394, %v277
        %v397 = vld [vmem:[#allocation5 + $0x6] sm:$0x1]
        %v398 = vlaneseq
        %v399 = vshrl.u32 %v398, 7
        %v400 = vsub.s32 0, %v399
        %v401 = vrot.slane %v397, %v400
        %404 = vrot.lane.b32.xlu0 %v395, 65
        %v405 = vpop.permute.xlu0 %404
        %406 = vrot.lane.b32.xlu0 %v396, 65
        %v407 = vpop.permute.xlu0 %406
        %v410 = vmul.f32 %v401, %v405
        %v411 = vmul.f32 %v401, %v407
        %v412 = vadd.f32 %v383, %v410
        %v413 = vadd.f32 %v384, %v411
        %v414 = vld [vmem:[#allocation5 + $0x7] sm:$0x1]
        %v415 = vlaneseq
        %v416 = vshrl.u32 %v415, 7
        %v417 = vsub.s32 0, %v416
        %v418 = vrot.slane %v414, %v417
        %v419 = vmul.f32 %v418, %v276
        %v420 = vmul.f32 %v418, %v277
        %v421 = vadd.f32 %v412, %v419
        %v422 = vadd.f32 %v413, %v420
        %v423 = vld [vmem:[#allocation5 + $0x8] sm:$0x1]
        %v424 = vlaneseq
        %v425 = vshrl.u32 %v424, 7
        %v426 = vsub.s32 0, %v425
        %v427 = vrot.slane %v423, %v426
        %428 = vrot.lane.b32.xlu0 %v395, 127
        %v429 = vpop.permute.xlu0 %428
        %430 = vrot.lane.b32.xlu0 %v396, 127
        %v431 = vpop.permute.xlu0 %430
        %v434 = vmul.f32 %v427, %v429
        %v435 = vmul.f32 %v427, %v431
        %v436 = vadd.f32 %v421, %v434
        %v437 = vadd.f32 %v422, %v435
        %s438 = scalar_lea.vmem %s187, 16 [#allocation2]
        %v439 = vld [vmem:[%s438] sm:$0xff]
        %v440 = vld [vmem:[%s438 + $0x8] sm:$0xff]
        %443 = vrot.lane.b32.xlu0 %v439, 16
        %v444 = vpop.permute.xlu0 %443
        %445 = vrot.lane.b32.xlu0 %v440, 16
        %v446 = vpop.permute.xlu0 %445
        %449 = vrot.lane.b32.xlu0 %v439, 32
        %v450 = vpop.permute.xlu0 %449
        %451 = vrot.lane.b32.xlu0 %v440, 32
        %v452 = vpop.permute.xlu0 %451
        %455 = vrot.lane.b32.xlu0 %v439, 48
        %v456 = vpop.permute.xlu0 %455
        %457 = vrot.lane.b32.xlu0 %v440, 48
        %v458 = vpop.permute.xlu0 %457
        %v461 = vsel %vm255, %v439, %v444
        %v462 = vsel %vm255, %v440, %v446
        %v463 = vsel %vm258, %v461, %v450
        %v464 = vsel %vm258, %v462, %v452
        %v465 = vsel %vm261, %v463, %v456
        %v466 = vsel %vm261, %v464, %v458
        %v467 = vrot.slane %v465, 7
        %v468 = vrot.slane %v466, 7
        %v469 = vsel %vm266, %v467, %v468
        %v470 = vsel %vm266, %v468, %v467
        %v471 = vmul.f32 %v470, %v225
        %v472 = vmul.f32 %v469, %v226
        %v473 = vrot.slane %v465, 1
        %v474 = vrot.slane %v466, 1
        %v475 = vsel %vm273, %v473, %v474
        %v476 = vsel %vm273, %v474, %v473
        %v477 = vmul.f32 %v475, %v231
        %v478 = vmul.f32 %v476, %v232
        %479 = vrot.lane.b32.xlu0 %v471, 64
        %v480 = vpop.permute.xlu0 %479
        %v481 = vsel %vm278, %v480, %v471
        %482 = vrot.lane.b32.xlu0 %v472, 64
        %v483 = vpop.permute.xlu0 %482
        %v484 = vsel %vm278, %v483, %v472
        %485 = vrot.lane.b32.xlu0 %v481, 64
        %v486 = vpop.permute.xlu0 %485
        %487 = vrot.lane.b32.xlu0 %v484, 64
        %v488 = vpop.permute.xlu0 %487
        %v489 = vsel %vm278, %v486, %v471
        %v490 = vsel %vm278, %v488, %v472
        %v491 = vld [vmem:[#allocation5 + $0x9] sm:$0x1]
        %v492 = vlaneseq
        %v493 = vshrl.u32 %v492, 7
        %v494 = vsub.s32 0, %v493
        %v495 = vrot.slane %v491, %v494
        %498 = vrot.lane.b32.xlu0 %v489, 65
        %v499 = vpop.permute.xlu0 %498
        %500 = vrot.lane.b32.xlu0 %v490, 65
        %v501 = vpop.permute.xlu0 %500
        %v504 = vmul.f32 %v495, %v499
        %v505 = vmul.f32 %v495, %v501
        %v506 = vadd.f32 %v436, %v504
        %v507 = vadd.f32 %v437, %v505
        %v508 = vld [vmem:[#allocation5 + $0xa] sm:$0x1]
        %v509 = vlaneseq
        %v510 = vshrl.u32 %v509, 7
        %v511 = vsub.s32 0, %v510
        %v512 = vrot.slane %v508, %v511
        %v513 = vmul.f32 %v512, %v471
        %v514 = vmul.f32 %v512, %v472
        %v515 = vadd.f32 %v506, %v513
        %v516 = vadd.f32 %v507, %v514
        %v517 = vld [vmem:[#allocation5 + $0xb] sm:$0x1]
        %v518 = vlaneseq
        %v519 = vshrl.u32 %v518, 7
        %v520 = vsub.s32 0, %v519
        %v521 = vrot.slane %v517, %v520
        %522 = vrot.lane.b32.xlu0 %v489, 127
        %v523 = vpop.permute.xlu0 %522
        %524 = vrot.lane.b32.xlu0 %v490, 127
        %v525 = vpop.permute.xlu0 %524
        %v528 = vmul.f32 %v521, %v523
        %v529 = vmul.f32 %v521, %v525
        %v530 = vadd.f32 %v515, %v528
        %v531 = vadd.f32 %v516, %v529
        %532 = vrot.lane.b32.xlu0 %v465, 64
        %v533 = vpop.permute.xlu0 %532
        %v534 = vsel %vm278, %v533, %v465
        %535 = vrot.lane.b32.xlu0 %v466, 64
        %v536 = vpop.permute.xlu0 %535
        %v537 = vsel %vm278, %v536, %v466
        %538 = vrot.lane.b32.xlu0 %v534, 64
        %v539 = vpop.permute.xlu0 %538
        %540 = vrot.lane.b32.xlu0 %v537, 64
        %v541 = vpop.permute.xlu0 %540
        %v542 = vsel %vm278, %v539, %v465
        %v543 = vsel %vm278, %v541, %v466
        %v544 = vld [vmem:[#allocation5 + $0xc] sm:$0x1]
        %v545 = vlaneseq
        %v546 = vshrl.u32 %v545, 7
        %v547 = vsub.s32 0, %v546
        %v548 = vrot.slane %v544, %v547
        %551 = vrot.lane.b32.xlu0 %v542, 65
        %v552 = vpop.permute.xlu0 %551
        %553 = vrot.lane.b32.xlu0 %v543, 65
        %v554 = vpop.permute.xlu0 %553
        %v557 = vmul.f32 %v548, %v552
        %v558 = vmul.f32 %v548, %v554
        %v559 = vadd.f32 %v530, %v557
        %v560 = vadd.f32 %v531, %v558
        %v561 = vld [vmem:[#allocation5 + $0xd] sm:$0x1]
        %v562 = vlaneseq
        %v563 = vshrl.u32 %v562, 7
        %v564 = vsub.s32 0, %v563
        %v565 = vrot.slane %v561, %v564
        %v566 = vmul.f32 %v565, %v465
        %v567 = vmul.f32 %v565, %v466
        %v568 = vadd.f32 %v559, %v566
        %v569 = vadd.f32 %v560, %v567
        %v570 = vld [vmem:[#allocation5 + $0xe] sm:$0x1]
        %v571 = vlaneseq
        %v572 = vshrl.u32 %v571, 7
        %v573 = vsub.s32 0, %v572
        %v574 = vrot.slane %v570, %v573
        %575 = vrot.lane.b32.xlu0 %v542, 127
        %v576 = vpop.permute.xlu0 %575
        %577 = vrot.lane.b32.xlu0 %v543, 127
        %v578 = vpop.permute.xlu0 %577
        %v581 = vmul.f32 %v574, %v576
        %v582 = vmul.f32 %v574, %v578
        %v583 = vadd.f32 %v568, %v581
        %v584 = vadd.f32 %v569, %v582
        %585 = vrot.lane.b32.xlu0 %v477, 64
        %v586 = vpop.permute.xlu0 %585
        %v587 = vsel %vm278, %v586, %v477
        %588 = vrot.lane.b32.xlu0 %v478, 64
        %v589 = vpop.permute.xlu0 %588
        %v590 = vsel %vm278, %v589, %v478
        %591 = vrot.lane.b32.xlu0 %v587, 64
        %v592 = vpop.permute.xlu0 %591
        %593 = vrot.lane.b32.xlu0 %v590, 64
        %v594 = vpop.permute.xlu0 %593
        %v595 = vsel %vm278, %v592, %v477
        %v596 = vsel %vm278, %v594, %v478
        %v597 = vld [vmem:[#allocation5 + $0xf] sm:$0x1]
        %v598 = vlaneseq
        %v599 = vshrl.u32 %v598, 7
        %v600 = vsub.s32 0, %v599
        %v601 = vrot.slane %v597, %v600
        %604 = vrot.lane.b32.xlu0 %v595, 65
        %v605 = vpop.permute.xlu0 %604
        %606 = vrot.lane.b32.xlu0 %v596, 65
        %v607 = vpop.permute.xlu0 %606
        %v610 = vmul.f32 %v601, %v605
        %v611 = vmul.f32 %v601, %v607
        %v612 = vadd.f32 %v583, %v610
        %v613 = vadd.f32 %v584, %v611
        %v614 = vld [vmem:[#allocation5 + $0x10] sm:$0x1]
        %v615 = vlaneseq
        %v616 = vshrl.u32 %v615, 7
        %v617 = vsub.s32 0, %v616
        %v618 = vrot.slane %v614, %v617
        %v619 = vmul.f32 %v618, %v477
        %v620 = vmul.f32 %v618, %v478
        %v621 = vadd.f32 %v612, %v619
        %v622 = vadd.f32 %v613, %v620
        %v623 = vld [vmem:[#allocation5 + $0x11] sm:$0x1]
        %v624 = vlaneseq
        %v625 = vshrl.u32 %v624, 7
        %v626 = vsub.s32 0, %v625
        %v627 = vrot.slane %v623, %v626
        %628 = vrot.lane.b32.xlu0 %v595, 127
        %v629 = vpop.permute.xlu0 %628
        %630 = vrot.lane.b32.xlu0 %v596, 127
        %v631 = vpop.permute.xlu0 %630
        %v634 = vmul.f32 %v627, %v629
        %v635 = vmul.f32 %v627, %v631
        %v636 = vadd.f32 %v621, %v634
        %v637 = vadd.f32 %v622, %v635
        %s638 = scalar_lea.vmem %s187, 32 [#allocation2]
        %v639 = vld [vmem:[%s638] sm:$0xff]
        %v640 = vld [vmem:[%s638 + $0x8] sm:$0xff]
        %643 = vrot.lane.b32.xlu0 %v639, 16
        %v644 = vpop.permute.xlu0 %643
        %645 = vrot.lane.b32.xlu0 %v640, 16
        %v646 = vpop.permute.xlu0 %645
        %649 = vrot.lane.b32.xlu0 %v639, 32
        %v650 = vpop.permute.xlu0 %649
        %651 = vrot.lane.b32.xlu0 %v640, 32
        %v652 = vpop.permute.xlu0 %651
        %655 = vrot.lane.b32.xlu0 %v639, 48
        %v656 = vpop.permute.xlu0 %655
        %657 = vrot.lane.b32.xlu0 %v640, 48
        %v658 = vpop.permute.xlu0 %657
        %v661 = vsel %vm255, %v639, %v644
        %v662 = vsel %vm255, %v640, %v646
        %v663 = vsel %vm258, %v661, %v650
        %v664 = vsel %vm258, %v662, %v652
        %v665 = vsel %vm261, %v663, %v656
        %v666 = vsel %vm261, %v664, %v658
        %v667 = vrot.slane %v665, 7
        %v668 = vrot.slane %v666, 7
        %v669 = vsel %vm266, %v667, %v668
        %v670 = vsel %vm266, %v668, %v667
        %v671 = vmul.f32 %v670, %v225
        %v672 = vmul.f32 %v669, %v226
        %v673 = vrot.slane %v665, 1
        %v674 = vrot.slane %v666, 1
        %v675 = vsel %vm273, %v673, %v674
        %v676 = vsel %vm273, %v674, %v673
        %v677 = vmul.f32 %v675, %v231
        %v678 = vmul.f32 %v676, %v232
        %679 = vrot.lane.b32.xlu0 %v671, 64
        %v680 = vpop.permute.xlu0 %679
        %v681 = vsel %vm278, %v680, %v671
        %682 = vrot.lane.b32.xlu0 %v672, 64
        %v683 = vpop.permute.xlu0 %682
        %v684 = vsel %vm278, %v683, %v672
        %685 = vrot.lane.b32.xlu0 %v681, 64
        %v686 = vpop.permute.xlu0 %685
        %687 = vrot.lane.b32.xlu0 %v684, 64
        %v688 = vpop.permute.xlu0 %687
        %v689 = vsel %vm278, %v686, %v671
        %v690 = vsel %vm278, %v688, %v672
        %v691 = vld [vmem:[#allocation5 + $0x12] sm:$0x1]
        %v692 = vlaneseq
        %v693 = vshrl.u32 %v692, 7
        %v694 = vsub.s32 0, %v693
        %v695 = vrot.slane %v691, %v694
        %698 = vrot.lane.b32.xlu0 %v689, 65
        %v699 = vpop.permute.xlu0 %698
        %700 = vrot.lane.b32.xlu0 %v690, 65
        %v701 = vpop.permute.xlu0 %700
        %v704 = vmul.f32 %v695, %v699
        %v705 = vmul.f32 %v695, %v701
        %v706 = vadd.f32 %v636, %v704
        %v707 = vadd.f32 %v637, %v705
        %v708 = vld [vmem:[#allocation5 + $0x13] sm:$0x1]
        %v709 = vlaneseq
        %v710 = vshrl.u32 %v709, 7
        %v711 = vsub.s32 0, %v710
        %v712 = vrot.slane %v708, %v711
        %v713 = vmul.f32 %v712, %v671
        %v714 = vmul.f32 %v712, %v672
        %v715 = vadd.f32 %v706, %v713
        %v716 = vadd.f32 %v707, %v714
        %v717 = vld [vmem:[#allocation5 + $0x14] sm:$0x1]
        %v718 = vlaneseq
        %v719 = vshrl.u32 %v718, 7
        %v720 = vsub.s32 0, %v719
        %v721 = vrot.slane %v717, %v720
        %722 = vrot.lane.b32.xlu0 %v689, 127
        %v723 = vpop.permute.xlu0 %722
        %724 = vrot.lane.b32.xlu0 %v690, 127
        %v725 = vpop.permute.xlu0 %724
        %v728 = vmul.f32 %v721, %v723
        %v729 = vmul.f32 %v721, %v725
        %v730 = vadd.f32 %v715, %v728
        %v731 = vadd.f32 %v716, %v729
        %732 = vrot.lane.b32.xlu0 %v665, 64
        %v733 = vpop.permute.xlu0 %732
        %v734 = vsel %vm278, %v733, %v665
        %735 = vrot.lane.b32.xlu0 %v666, 64
        %v736 = vpop.permute.xlu0 %735
        %v737 = vsel %vm278, %v736, %v666
        %738 = vrot.lane.b32.xlu0 %v734, 64
        %v739 = vpop.permute.xlu0 %738
        %740 = vrot.lane.b32.xlu0 %v737, 64
        %v741 = vpop.permute.xlu0 %740
        %v742 = vsel %vm278, %v739, %v665
        %v743 = vsel %vm278, %v741, %v666
        %v744 = vld [vmem:[#allocation5 + $0x15] sm:$0x1]
        %v745 = vlaneseq
        %v746 = vshrl.u32 %v745, 7
        %v747 = vsub.s32 0, %v746
        %v748 = vrot.slane %v744, %v747
        %751 = vrot.lane.b32.xlu0 %v742, 65
        %v752 = vpop.permute.xlu0 %751
        %753 = vrot.lane.b32.xlu0 %v743, 65
        %v754 = vpop.permute.xlu0 %753
        %v757 = vmul.f32 %v748, %v752
        %v758 = vmul.f32 %v748, %v754
        %v759 = vadd.f32 %v730, %v757
        %v760 = vadd.f32 %v731, %v758
        %v761 = vld [vmem:[#allocation5 + $0x16] sm:$0x1]
        %v762 = vlaneseq
        %v763 = vshrl.u32 %v762, 7
        %v764 = vsub.s32 0, %v763
        %v765 = vrot.slane %v761, %v764
        %v766 = vmul.f32 %v765, %v665
        %v767 = vmul.f32 %v765, %v666
        %v768 = vadd.f32 %v759, %v766
        %v769 = vadd.f32 %v760, %v767
        %v770 = vld [vmem:[#allocation5 + $0x17] sm:$0x1]
        %v771 = vlaneseq
        %v772 = vshrl.u32 %v771, 7
        %v773 = vsub.s32 0, %v772
        %v774 = vrot.slane %v770, %v773
        %775 = vrot.lane.b32.xlu0 %v742, 127
        %v776 = vpop.permute.xlu0 %775
        %777 = vrot.lane.b32.xlu0 %v743, 127
        %v778 = vpop.permute.xlu0 %777
        %v781 = vmul.f32 %v774, %v776
        %v782 = vmul.f32 %v774, %v778
        %v783 = vadd.f32 %v768, %v781
        %v784 = vadd.f32 %v769, %v782
        %785 = vrot.lane.b32.xlu0 %v677, 64
        %v786 = vpop.permute.xlu0 %785
        %v787 = vsel %vm278, %v786, %v677
        %788 = vrot.lane.b32.xlu0 %v678, 64
        %v789 = vpop.permute.xlu0 %788
        %v790 = vsel %vm278, %v789, %v678
        %791 = vrot.lane.b32.xlu0 %v787, 64
        %v792 = vpop.permute.xlu0 %791
        %793 = vrot.lane.b32.xlu0 %v790, 64
        %v794 = vpop.permute.xlu0 %793
        %v795 = vsel %vm278, %v792, %v677
        %v796 = vsel %vm278, %v794, %v678
        %v797 = vld [vmem:[#allocation5 + $0x18] sm:$0x1]
        %v798 = vlaneseq
        %v799 = vshrl.u32 %v798, 7
        %v800 = vsub.s32 0, %v799
        %v801 = vrot.slane %v797, %v800
        %804 = vrot.lane.b32.xlu0 %v795, 65
        %v805 = vpop.permute.xlu0 %804
        %806 = vrot.lane.b32.xlu0 %v796, 65
        %v807 = vpop.permute.xlu0 %806
        %v810 = vmul.f32 %v801, %v805
        %v811 = vmul.f32 %v801, %v807
        %v812 = vadd.f32 %v783, %v810
        %v813 = vadd.f32 %v784, %v811
        %v814 = vld [vmem:[#allocation5 + $0x19] sm:$0x1]
        %v815 = vlaneseq
        %v816 = vshrl.u32 %v815, 7
        %v817 = vsub.s32 0, %v816
        %v818 = vrot.slane %v814, %v817
        %v819 = vmul.f32 %v818, %v677
        %v820 = vmul.f32 %v818, %v678
        %v821 = vadd.f32 %v812, %v819
        %v822 = vadd.f32 %v813, %v820
        %v823 = vld [vmem:[#allocation5 + $0x1a] sm:$0x1]
        %v824 = vlaneseq
        %v825 = vshrl.u32 %v824, 7
        %v826 = vsub.s32 0, %v825
        %v827 = vrot.slane %v823, %v826
        %828 = vrot.lane.b32.xlu0 %v795, 127
        %v829 = vpop.permute.xlu0 %828
        %830 = vrot.lane.b32.xlu0 %v796, 127
        %v831 = vpop.permute.xlu0 %830
        %v834 = vmul.f32 %v827, %v829
        %v835 = vmul.f32 %v827, %v831
        %v836 = vadd.f32 %v821, %v834
        %v837 = vadd.f32 %v822, %v835
        %s838 = scalar_lea.vmem %s187, 48 [#allocation2]
        %v839 = vld [vmem:[%s838] sm:$0xff]
        %v840 = vld [vmem:[%s838 + $0x8] sm:$0xff]
        %843 = vrot.lane.b32.xlu0 %v839, 16
        %v844 = vpop.permute.xlu0 %843
        %845 = vrot.lane.b32.xlu0 %v840, 16
        %v846 = vpop.permute.xlu0 %845
        %849 = vrot.lane.b32.xlu0 %v839, 32
        %v850 = vpop.permute.xlu0 %849
        %851 = vrot.lane.b32.xlu0 %v840, 32
        %v852 = vpop.permute.xlu0 %851
        %855 = vrot.lane.b32.xlu0 %v839, 48
        %v856 = vpop.permute.xlu0 %855
        %857 = vrot.lane.b32.xlu0 %v840, 48
        %v858 = vpop.permute.xlu0 %857
        %v861 = vsel %vm255, %v839, %v844
        %v862 = vsel %vm255, %v840, %v846
        %v863 = vsel %vm258, %v861, %v850
        %v864 = vsel %vm258, %v862, %v852
        %v865 = vsel %vm261, %v863, %v856
        %v866 = vsel %vm261, %v864, %v858
        %v867 = vrot.slane %v865, 7
        %v868 = vrot.slane %v866, 7
        %v869 = vsel %vm266, %v867, %v868
        %v870 = vsel %vm266, %v868, %v867
        %v871 = vmul.f32 %v870, %v225
        %v872 = vmul.f32 %v869, %v226
        %v873 = vrot.slane %v865, 1
        %v874 = vrot.slane %v866, 1
        %v875 = vsel %vm273, %v873, %v874
        %v876 = vsel %vm273, %v874, %v873
        %v877 = vmul.f32 %v875, %v231
        %v878 = vmul.f32 %v876, %v232
        %879 = vrot.lane.b32.xlu0 %v871, 64
        %v880 = vpop.permute.xlu0 %879
        %v881 = vsel %vm278, %v880, %v871
        %882 = vrot.lane.b32.xlu0 %v872, 64
        %v883 = vpop.permute.xlu0 %882
        %v884 = vsel %vm278, %v883, %v872
        %885 = vrot.lane.b32.xlu0 %v881, 64
        %v886 = vpop.permute.xlu0 %885
        %887 = vrot.lane.b32.xlu0 %v884, 64
        %v888 = vpop.permute.xlu0 %887
        %v889 = vsel %vm278, %v886, %v871
        %v890 = vsel %vm278, %v888, %v872
        %v891 = vld [vmem:[#allocation5 + $0x1b] sm:$0x1]
        %v892 = vlaneseq
        %v893 = vshrl.u32 %v892, 7
        %v894 = vsub.s32 0, %v893
        %v895 = vrot.slane %v891, %v894
        %898 = vrot.lane.b32.xlu0 %v889, 65
        %v899 = vpop.permute.xlu0 %898
        %900 = vrot.lane.b32.xlu0 %v890, 65
        %v901 = vpop.permute.xlu0 %900
        %v904 = vmul.f32 %v895, %v899
        %v905 = vmul.f32 %v895, %v901
        %v906 = vadd.f32 %v836, %v904
        %v907 = vadd.f32 %v837, %v905
        %v908 = vld [vmem:[#allocation5 + $0x1c] sm:$0x1]
        %v909 = vlaneseq
        %v910 = vshrl.u32 %v909, 7
        %v911 = vsub.s32 0, %v910
        %v912 = vrot.slane %v908, %v911
        %v913 = vmul.f32 %v912, %v871
        %v914 = vmul.f32 %v912, %v872
        %v915 = vadd.f32 %v906, %v913
        %v916 = vadd.f32 %v907, %v914
        %v917 = vld [vmem:[#allocation5 + $0x1d] sm:$0x1]
        %v918 = vlaneseq
        %v919 = vshrl.u32 %v918, 7
        %v920 = vsub.s32 0, %v919
        %v921 = vrot.slane %v917, %v920
        %922 = vrot.lane.b32.xlu0 %v889, 127
        %v923 = vpop.permute.xlu0 %922
        %924 = vrot.lane.b32.xlu0 %v890, 127
        %v925 = vpop.permute.xlu0 %924
        %v928 = vmul.f32 %v921, %v923
        %v929 = vmul.f32 %v921, %v925
        %v930 = vadd.f32 %v915, %v928
        %v931 = vadd.f32 %v916, %v929
        %932 = vrot.lane.b32.xlu0 %v865, 64
        %v933 = vpop.permute.xlu0 %932
        %v934 = vsel %vm278, %v933, %v865
        %935 = vrot.lane.b32.xlu0 %v866, 64
        %v936 = vpop.permute.xlu0 %935
        %v937 = vsel %vm278, %v936, %v866
        %938 = vrot.lane.b32.xlu0 %v934, 64
        %v939 = vpop.permute.xlu0 %938
        %940 = vrot.lane.b32.xlu0 %v937, 64
        %v941 = vpop.permute.xlu0 %940
        %v942 = vsel %vm278, %v939, %v865
        %v943 = vsel %vm278, %v941, %v866
        %v944 = vld [vmem:[#allocation5 + $0x1e] sm:$0x1]
        %v945 = vlaneseq
        %v946 = vshrl.u32 %v945, 7
        %v947 = vsub.s32 0, %v946
        %v948 = vrot.slane %v944, %v947
        %951 = vrot.lane.b32.xlu0 %v942, 65
        %v952 = vpop.permute.xlu0 %951
        %953 = vrot.lane.b32.xlu0 %v943, 65
        %v954 = vpop.permute.xlu0 %953
        %v957 = vmul.f32 %v948, %v952
        %v958 = vmul.f32 %v948, %v954
        %v959 = vadd.f32 %v930, %v957
        %v960 = vadd.f32 %v931, %v958
        %v961 = vld [vmem:[#allocation5 + $0x1f] sm:$0x1]
        %v962 = vlaneseq
        %v963 = vshrl.u32 %v962, 7
        %v964 = vsub.s32 0, %v963
        %v965 = vrot.slane %v961, %v964
        %v966 = vmul.f32 %v965, %v865
        %v967 = vmul.f32 %v965, %v866
        %v968 = vadd.f32 %v959, %v966
        %v969 = vadd.f32 %v960, %v967
        %v970 = vld [vmem:[#allocation5 + $0x20] sm:$0x1]
        %v971 = vlaneseq
        %v972 = vshrl.u32 %v971, 7
        %v973 = vsub.s32 0, %v972
        %v974 = vrot.slane %v970, %v973
        %975 = vrot.lane.b32.xlu0 %v942, 127
        %v976 = vpop.permute.xlu0 %975
        %977 = vrot.lane.b32.xlu0 %v943, 127
        %v978 = vpop.permute.xlu0 %977
        %v981 = vmul.f32 %v974, %v976
        %v982 = vmul.f32 %v974, %v978
        %v983 = vadd.f32 %v968, %v981
        %v984 = vadd.f32 %v969, %v982
        %985 = vrot.lane.b32.xlu0 %v877, 64
        %v986 = vpop.permute.xlu0 %985
        %v987 = vsel %vm278, %v986, %v877
        %988 = vrot.lane.b32.xlu0 %v878, 64
        %v989 = vpop.permute.xlu0 %988
        %v990 = vsel %vm278, %v989, %v878
        %991 = vrot.lane.b32.xlu0 %v987, 64
        %v992 = vpop.permute.xlu0 %991
        %993 = vrot.lane.b32.xlu0 %v990, 64
        %v994 = vpop.permute.xlu0 %993
        %v995 = vsel %vm278, %v992, %v877
        %v996 = vsel %vm278, %v994, %v878
        %v997 = vld [vmem:[#allocation5 + $0x21] sm:$0x1]
        %v998 = vlaneseq
        %v999 = vshrl.u32 %v998, 7
        %v1000 = vsub.s32 0, %v999
        %v1001 = vrot.slane %v997, %v1000
        %1004 = vrot.lane.b32.xlu0 %v995, 65
        %v1005 = vpop.permute.xlu0 %1004
        %1006 = vrot.lane.b32.xlu0 %v996, 65
        %v1007 = vpop.permute.xlu0 %1006
        %v1010 = vmul.f32 %v1001, %v1005
        %v1011 = vmul.f32 %v1001, %v1007
        %v1012 = vadd.f32 %v983, %v1010
        %v1013 = vadd.f32 %v984, %v1011
        %v1014 = vld [vmem:[#allocation5 + $0x22] sm:$0x1]
        %v1015 = vlaneseq
        %v1016 = vshrl.u32 %v1015, 7
        %v1017 = vsub.s32 0, %v1016
        %v1018 = vrot.slane %v1014, %v1017
        %v1019 = vmul.f32 %v1018, %v877
        %v1020 = vmul.f32 %v1018, %v878
        %v1021 = vadd.f32 %v1012, %v1019
        %v1022 = vadd.f32 %v1013, %v1020
        %v1023 = vld [vmem:[#allocation5 + $0x23] sm:$0x1]
        %v1024 = vlaneseq
        %v1025 = vshrl.u32 %v1024, 7
        %v1026 = vsub.s32 0, %v1025
        %v1027 = vrot.slane %v1023, %v1026
        %1028 = vrot.lane.b32.xlu0 %v995, 127
        %v1029 = vpop.permute.xlu0 %1028
        %1030 = vrot.lane.b32.xlu0 %v996, 127
        %v1031 = vpop.permute.xlu0 %1030
        %v1034 = vmul.f32 %v1027, %v1029
        %v1035 = vmul.f32 %v1027, %v1031
        %v1036 = vadd.f32 %v1021, %v1034
        %v1037 = vadd.f32 %v1022, %v1035
        %v1038 = vmax.f32 %v1036, 0.0
        %v1039 = vmax.f32 %v1037, 0.0
        %1042 = vrot.lane.b32.xlu0 %v1038, 16
        %v1043 = vpop.permute.xlu0 %1042
        %1044 = vrot.lane.b32.xlu0 %v1039, 16
        %v1045 = vpop.permute.xlu0 %1044
        %1048 = vrot.lane.b32.xlu0 %v1038, 32
        %v1049 = vpop.permute.xlu0 %1048
        %1050 = vrot.lane.b32.xlu0 %v1039, 32
        %v1051 = vpop.permute.xlu0 %1050
        %1054 = vrot.lane.b32.xlu0 %v1038, 48
        %v1055 = vpop.permute.xlu0 %1054
        %1056 = vrot.lane.b32.xlu0 %v1039, 48
        %v1057 = vpop.permute.xlu0 %1056
        %1060 = vrot.lane.b32.xlu0 %v1038, 64
        %v1061 = vpop.permute.xlu0 %1060
        %1062 = vrot.lane.b32.xlu0 %v1039, 64
        %v1063 = vpop.permute.xlu0 %1062
        %1066 = vrot.lane.b32.xlu0 %v1038, 80
        %v1067 = vpop.permute.xlu0 %1066
        %1068 = vrot.lane.b32.xlu0 %v1039, 80
        %v1069 = vpop.permute.xlu0 %1068
        %1072 = vrot.lane.b32.xlu0 %v1038, 96
        %v1073 = vpop.permute.xlu0 %1072
        %1074 = vrot.lane.b32.xlu0 %v1039, 96
        %v1075 = vpop.permute.xlu0 %1074
        %1078 = vrot.lane.b32.xlu0 %v1038, 112
        %v1079 = vpop.permute.xlu0 %1078
        %1080 = vrot.lane.b32.xlu0 %v1039, 112
        %v1081 = vpop.permute.xlu0 %1080
        %v1084 = vsel %vm255, %v1038, %v1043
        %v1085 = vsel %vm255, %v1039, %v1045
        %v1086 = vsel %vm258, %v1084, %v1049
        %v1087 = vsel %vm258, %v1085, %v1051
        %v1088 = vsel %vm261, %v1086, %v1055
        %v1089 = vsel %vm261, %v1087, %v1057
        %vm1090 = vcmask 523264
        %v1091 = vsel %vm1090, %v1088, %v1061
        %v1092 = vsel %vm1090, %v1089, %v1063
        %vm1093 = vcmask 654336
        %v1094 = vsel %vm1093, %v1091, %v1067
        %v1095 = vsel %vm1093, %v1092, %v1069
        %vm1096 = vcmask 785408
        %v1097 = vsel %vm1096, %v1094, %v1073
        %v1098 = vsel %vm1096, %v1095, %v1075
        %vm1099 = vcmask 916480
        %v1100 = vsel %vm1099, %v1097, %v1079
        %v1101 = vsel %vm1099, %v1098, %v1081
        %v1102 = vrot.slane %v1100, 7
        %v1103 = vrot.slane %v1101, 7
        %v1104 = vsel %vm266, %v1102, %v1103
        %v1105 = vsel %vm266, %v1103, %v1102
        %v1106 = vmul.f32 %v1105, %v225
        %v1107 = vmul.f32 %v1104, %v226
        %v1108 = vrot.slane %v1100, 1
        %v1109 = vrot.slane %v1101, 1
        %v1110 = vsel %vm273, %v1108, %v1109
        %v1111 = vsel %vm273, %v1109, %v1108
        %v1112 = vmul.f32 %v1110, %v231
        %v1113 = vmul.f32 %v1111, %v232
        %1114 = vrot.lane.b32.xlu0 %v1106, 1
        %v1115 = vpop.permute.xlu0 %1114
        %1116 = vrot.lane.b32.xlu0 %v1107, 1
        %v1117 = vpop.permute.xlu0 %1116
        %v1118 = vld [vmem:[#allocation7] sm:$0x1]
        %v1119 = vlaneseq
        %v1120 = vshrl.u32 %v1119, 7
        %v1121 = vsub.s32 0, %v1120
        %v1122 = vrot.slane %v1118, %v1121
        %v1123 = vmul.f32 %v1122, %v1115
        %v1124 = vmul.f32 %v1122, %v1117
        %v1125 = vadd.f32 %v1123, 0.0
        %v1126 = vadd.f32 %v1124, 0.0
        %v1127 = vld [vmem:[#allocation7 + $0x1] sm:$0x1]
        %v1128 = vlaneseq
        %v1129 = vshrl.u32 %v1128, 7
        %v1130 = vsub.s32 0, %v1129
        %v1131 = vrot.slane %v1127, %v1130
        %v1132 = vmul.f32 %v1131, %v1106
        %v1133 = vmul.f32 %v1131, %v1107
        %v1134 = vadd.f32 %v1125, %v1132
        %v1135 = vadd.f32 %v1126, %v1133
        %1136 = vrot.lane.b32.xlu0 %v1106, 127
        %v1137 = vpop.permute.xlu0 %1136
        %1138 = vrot.lane.b32.xlu0 %v1107, 127
        %v1139 = vpop.permute.xlu0 %1138
        %v1140 = vld [vmem:[#allocation7 + $0x2] sm:$0x1]
        %v1141 = vlaneseq
        %v1142 = vshrl.u32 %v1141, 7
        %v1143 = vsub.s32 0, %v1142
        %v1144 = vrot.slane %v1140, %v1143
        %v1145 = vmul.f32 %v1144, %v1137
        %v1146 = vmul.f32 %v1144, %v1139
        %v1147 = vadd.f32 %v1134, %v1145
        %v1148 = vadd.f32 %v1135, %v1146
        %1149 = vrot.lane.b32.xlu0 %v1100, 1
        %v1150 = vpop.permute.xlu0 %1149
        %1151 = vrot.lane.b32.xlu0 %v1101, 1
        %v1152 = vpop.permute.xlu0 %1151
        %v1153 = vld [vmem:[#allocation7 + $0x3] sm:$0x1]
        %v1154 = vlaneseq
        %v1155 = vshrl.u32 %v1154, 7
        %v1156 = vsub.s32 0, %v1155
        %v1157 = vrot.slane %v1153, %v1156
        %v1158 = vmul.f32 %v1157, %v1150
        %v1159 = vmul.f32 %v1157, %v1152
        %v1160 = vadd.f32 %v1147, %v1158
        %v1161 = vadd.f32 %v1148, %v1159
        %v1162 = vld [vmem:[#allocation7 + $0x4] sm:$0x1]
        %v1163 = vlaneseq
        %v1164 = vshrl.u32 %v1163, 7
        %v1165 = vsub.s32 0, %v1164
        %v1166 = vrot.slane %v1162, %v1165
        %v1167 = vmul.f32 %v1166, %v1100
        %v1168 = vmul.f32 %v1166, %v1101
        %v1169 = vadd.f32 %v1160, %v1167
        %v1170 = vadd.f32 %v1161, %v1168
        %1171 = vrot.lane.b32.xlu0 %v1100, 127
        %v1172 = vpop.permute.xlu0 %1171
        %1173 = vrot.lane.b32.xlu0 %v1101, 127
        %v1174 = vpop.permute.xlu0 %1173
        %v1175 = vld [vmem:[#allocation7 + $0x5] sm:$0x1]
        %v1176 = vlaneseq
        %v1177 = vshrl.u32 %v1176, 7
        %v1178 = vsub.s32 0, %v1177
        %v1179 = vrot.slane %v1175, %v1178
        %v1180 = vmul.f32 %v1179, %v1172
        %v1181 = vmul.f32 %v1179, %v1174
        %v1182 = vadd.f32 %v1169, %v1180
        %v1183 = vadd.f32 %v1170, %v1181
        %1184 = vrot.lane.b32.xlu0 %v1112, 1
        %v1185 = vpop.permute.xlu0 %1184
        %1186 = vrot.lane.b32.xlu0 %v1113, 1
        %v1187 = vpop.permute.xlu0 %1186
        %v1188 = vld [vmem:[#allocation7 + $0x6] sm:$0x1]
        %v1189 = vlaneseq
        %v1190 = vshrl.u32 %v1189, 7
        %v1191 = vsub.s32 0, %v1190
        %v1192 = vrot.slane %v1188, %v1191
        %v1193 = vmul.f32 %v1192, %v1185
        %v1194 = vmul.f32 %v1192, %v1187
        %v1195 = vadd.f32 %v1182, %v1193
        %v1196 = vadd.f32 %v1183, %v1194
        %v1197 = vld [vmem:[#allocation7 + $0x7] sm:$0x1]
        %v1198 = vlaneseq
        %v1199 = vshrl.u32 %v1198, 7
        %v1200 = vsub.s32 0, %v1199
        %v1201 = vrot.slane %v1197, %v1200
        %v1202 = vmul.f32 %v1201, %v1112
        %v1203 = vmul.f32 %v1201, %v1113
        %v1204 = vadd.f32 %v1195, %v1202
        %v1205 = vadd.f32 %v1196, %v1203
        %1206 = vrot.lane.b32.xlu0 %v1112, 127
        %v1207 = vpop.permute.xlu0 %1206
        %1208 = vrot.lane.b32.xlu0 %v1113, 127
        %v1209 = vpop.permute.xlu0 %1208
        %v1210 = vld [vmem:[#allocation7 + $0x8] sm:$0x1]
        %v1211 = vlaneseq
        %v1212 = vshrl.u32 %v1211, 7
        %v1213 = vsub.s32 0, %v1212
        %v1214 = vrot.slane %v1210, %v1213
        %v1215 = vmul.f32 %v1214, %v1207
        %v1216 = vmul.f32 %v1214, %v1209
        %v1217 = vadd.f32 %v1204, %v1215
        %v1218 = vadd.f32 %v1205, %v1216
        %v1219 = vsel %vm255, %v1079, %v1038
        %v1220 = vsel %vm255, %v1081, %v1039
        %v1221 = vsel %vm258, %v1219, %v1043
        %v1222 = vsel %vm258, %v1220, %v1045
        %v1223 = vsel %vm261, %v1221, %v1049
        %v1224 = vsel %vm261, %v1222, %v1051
        %v1225 = vsel %vm1090, %v1223, %v1055
        %v1226 = vsel %vm1090, %v1224, %v1057
        %v1227 = vsel %vm1093, %v1225, %v1061
        %v1228 = vsel %vm1093, %v1226, %v1063
        %v1229 = vsel %vm1096, %v1227, %v1067
        %v1230 = vsel %vm1096, %v1228, %v1069
        %v1231 = vsel %vm1099, %v1229, %v1073
        %v1232 = vsel %vm1099, %v1230, %v1075
        %v1233 = vrot.slane %v1231, 7
        %v1234 = vrot.slane %v1232, 7
        %v1235 = vsel %vm266, %v1233, %v1234
        %v1236 = vsel %vm266, %v1234, %v1233
        %v1237 = vmul.f32 %v1236, %v225
        %v1238 = vmul.f32 %v1235, %v226
        %v1239 = vrot.slane %v1231, 1
        %v1240 = vrot.slane %v1232, 1
        %v1241 = vsel %vm273, %v1239, %v1240
        %v1242 = vsel %vm273, %v1240, %v1239
        %v1243 = vmul.f32 %v1241, %v231
        %v1244 = vmul.f32 %v1242, %v232
        %1245 = vrot.lane.b32.xlu0 %v1237, 1
        %v1246 = vpop.permute.xlu0 %1245
        %1247 = vrot.lane.b32.xlu0 %v1238, 1
        %v1248 = vpop.permute.xlu0 %1247
        %v1249 = vld [vmem:[#allocation7 + $0x9] sm:$0x1]
        %v1250 = vlaneseq
        %v1251 = vshrl.u32 %v1250, 7
        %v1252 = vsub.s32 0, %v1251
        %v1253 = vrot.slane %v1249, %v1252
        %v1254 = vmul.f32 %v1253, %v1246
        %v1255 = vmul.f32 %v1253, %v1248
        %v1256 = vadd.f32 %v1217, %v1254
        %v1257 = vadd.f32 %v1218, %v1255
        %v1258 = vld [vmem:[#allocation7 + $0xa] sm:$0x1]
        %v1259 = vlaneseq
        %v1260 = vshrl.u32 %v1259, 7
        %v1261 = vsub.s32 0, %v1260
        %v1262 = vrot.slane %v1258, %v1261
        %v1263 = vmul.f32 %v1262, %v1237
        %v1264 = vmul.f32 %v1262, %v1238
        %v1265 = vadd.f32 %v1256, %v1263
        %v1266 = vadd.f32 %v1257, %v1264
        %1267 = vrot.lane.b32.xlu0 %v1237, 127
        %v1268 = vpop.permute.xlu0 %1267
        %1269 = vrot.lane.b32.xlu0 %v1238, 127
        %v1270 = vpop.permute.xlu0 %1269
        %v1271 = vld [vmem:[#allocation7 + $0xb] sm:$0x1]
        %v1272 = vlaneseq
        %v1273 = vshrl.u32 %v1272, 7
        %v1274 = vsub.s32 0, %v1273
        %v1275 = vrot.slane %v1271, %v1274
        %v1276 = vmul.f32 %v1275, %v1268
        %v1277 = vmul.f32 %v1275, %v1270
        %v1278 = vadd.f32 %v1265, %v1276
        %v1279 = vadd.f32 %v1266, %v1277
        %1280 = vrot.lane.b32.xlu0 %v1231, 1
        %v1281 = vpop.permute.xlu0 %1280
        %1282 = vrot.lane.b32.xlu0 %v1232, 1
        %v1283 = vpop.permute.xlu0 %1282
        %v1284 = vld [vmem:[#allocation7 + $0xc] sm:$0x1]
        %v1285 = vlaneseq
        %v1286 = vshrl.u32 %v1285, 7
        %v1287 = vsub.s32 0, %v1286
        %v1288 = vrot.slane %v1284, %v1287
        %v1289 = vmul.f32 %v1288, %v1281
        %v1290 = vmul.f32 %v1288, %v1283
        %v1291 = vadd.f32 %v1278, %v1289
        %v1292 = vadd.f32 %v1279, %v1290
        %v1293 = vld [vmem:[#allocation7 + $0xd] sm:$0x1]
        %v1294 = vlaneseq
        %v1295 = vshrl.u32 %v1294, 7
        %v1296 = vsub.s32 0, %v1295
        %v1297 = vrot.slane %v1293, %v1296
        %v1298 = vmul.f32 %v1297, %v1231
        %v1299 = vmul.f32 %v1297, %v1232
        %v1300 = vadd.f32 %v1291, %v1298
        %v1301 = vadd.f32 %v1292, %v1299
        %1302 = vrot.lane.b32.xlu0 %v1231, 127
        %v1303 = vpop.permute.xlu0 %1302
        %1304 = vrot.lane.b32.xlu0 %v1232, 127
        %v1305 = vpop.permute.xlu0 %1304
        %v1306 = vld [vmem:[#allocation7 + $0xe] sm:$0x1]
        %v1307 = vlaneseq
        %v1308 = vshrl.u32 %v1307, 7
        %v1309 = vsub.s32 0, %v1308
        %v1310 = vrot.slane %v1306, %v1309
        %v1311 = vmul.f32 %v1310, %v1303
        %v1312 = vmul.f32 %v1310, %v1305
        %v1313 = vadd.f32 %v1300, %v1311
        %v1314 = vadd.f32 %v1301, %v1312
        %1315 = vrot.lane.b32.xlu0 %v1243, 1
        %v1316 = vpop.permute.xlu0 %1315
        %1317 = vrot.lane.b32.xlu0 %v1244, 1
        %v1318 = vpop.permute.xlu0 %1317
        %v1319 = vld [vmem:[#allocation7 + $0xf] sm:$0x1]
        %v1320 = vlaneseq
        %v1321 = vshrl.u32 %v1320, 7
        %v1322 = vsub.s32 0, %v1321
        %v1323 = vrot.slane %v1319, %v1322
        %v1324 = vmul.f32 %v1323, %v1316
        %v1325 = vmul.f32 %v1323, %v1318
        %v1326 = vadd.f32 %v1313, %v1324
        %v1327 = vadd.f32 %v1314, %v1325
        %v1328 = vld [vmem:[#allocation7 + $0x10] sm:$0x1]
        %v1329 = vlaneseq
        %v1330 = vshrl.u32 %v1329, 7
        %v1331 = vsub.s32 0, %v1330
        %v1332 = vrot.slane %v1328, %v1331
        %v1333 = vmul.f32 %v1332, %v1243
        %v1334 = vmul.f32 %v1332, %v1244
        %v1335 = vadd.f32 %v1326, %v1333
        %v1336 = vadd.f32 %v1327, %v1334
        %1337 = vrot.lane.b32.xlu0 %v1243, 127
        %v1338 = vpop.permute.xlu0 %1337
        %1339 = vrot.lane.b32.xlu0 %v1244, 127
        %v1340 = vpop.permute.xlu0 %1339
        %v1341 = vld [vmem:[#allocation7 + $0x11] sm:$0x1]
        %v1342 = vlaneseq
        %v1343 = vshrl.u32 %v1342, 7
        %v1344 = vsub.s32 0, %v1343
        %v1345 = vrot.slane %v1341, %v1344
        %v1346 = vmul.f32 %v1345, %v1338
        %v1347 = vmul.f32 %v1345, %v1340
        %v1348 = vadd.f32 %v1335, %v1346
        %v1349 = vadd.f32 %v1336, %v1347
        %v1350 = vsel %vm255, %v1073, %v1079
        %v1351 = vsel %vm255, %v1075, %v1081
        %v1352 = vsel %vm258, %v1350, %v1038
        %v1353 = vsel %vm258, %v1351, %v1039
        %v1354 = vsel %vm261, %v1352, %v1043
        %v1355 = vsel %vm261, %v1353, %v1045
        %v1356 = vsel %vm1090, %v1354, %v1049
        %v1357 = vsel %vm1090, %v1355, %v1051
        %v1358 = vsel %vm1093, %v1356, %v1055
        %v1359 = vsel %vm1093, %v1357, %v1057
        %v1360 = vsel %vm1096, %v1358, %v1061
        %v1361 = vsel %vm1096, %v1359, %v1063
        %v1362 = vsel %vm1099, %v1360, %v1067
        %v1363 = vsel %vm1099, %v1361, %v1069
        %v1364 = vrot.slane %v1362, 7
        %v1365 = vrot.slane %v1363, 7
        %v1366 = vsel %vm266, %v1364, %v1365
        %v1367 = vsel %vm266, %v1365, %v1364
        %v1368 = vmul.f32 %v1367, %v225
        %v1369 = vmul.f32 %v1366, %v226
        %v1370 = vrot.slane %v1362, 1
        %v1371 = vrot.slane %v1363, 1
        %v1372 = vsel %vm273, %v1370, %v1371
        %v1373 = vsel %vm273, %v1371, %v1370
        %v1374 = vmul.f32 %v1372, %v231
        %v1375 = vmul.f32 %v1373, %v232
        %1376 = vrot.lane.b32.xlu0 %v1368, 1
        %v1377 = vpop.permute.xlu0 %1376
        %1378 = vrot.lane.b32.xlu0 %v1369, 1
        %v1379 = vpop.permute.xlu0 %1378
        %v1380 = vld [vmem:[#allocation7 + $0x12] sm:$0x1]
        %v1381 = vlaneseq
        %v1382 = vshrl.u32 %v1381, 7
        %v1383 = vsub.s32 0, %v1382
        %v1384 = vrot.slane %v1380, %v1383
        %v1385 = vmul.f32 %v1384, %v1377
        %v1386 = vmul.f32 %v1384, %v1379
        %v1387 = vadd.f32 %v1348, %v1385
        %v1388 = vadd.f32 %v1349, %v1386
        %v1389 = vld [vmem:[#allocation7 + $0x13] sm:$0x1]
        %v1390 = vlaneseq
        %v1391 = vshrl.u32 %v1390, 7
        %v1392 = vsub.s32 0, %v1391
        %v1393 = vrot.slane %v1389, %v1392
        %v1394 = vmul.f32 %v1393, %v1368
        %v1395 = vmul.f32 %v1393, %v1369
        %v1396 = vadd.f32 %v1387, %v1394
        %v1397 = vadd.f32 %v1388, %v1395
        %1398 = vrot.lane.b32.xlu0 %v1368, 127
        %v1399 = vpop.permute.xlu0 %1398
        %1400 = vrot.lane.b32.xlu0 %v1369, 127
        %v1401 = vpop.permute.xlu0 %1400
        %v1402 = vld [vmem:[#allocation7 + $0x14] sm:$0x1]
        %v1403 = vlaneseq
        %v1404 = vshrl.u32 %v1403, 7
        %v1405 = vsub.s32 0, %v1404
        %v1406 = vrot.slane %v1402, %v1405
        %v1407 = vmul.f32 %v1406, %v1399
        %v1408 = vmul.f32 %v1406, %v1401
        %v1409 = vadd.f32 %v1396, %v1407
        %v1410 = vadd.f32 %v1397, %v1408
        %1411 = vrot.lane.b32.xlu0 %v1362, 1
        %v1412 = vpop.permute.xlu0 %1411
        %1413 = vrot.lane.b32.xlu0 %v1363, 1
        %v1414 = vpop.permute.xlu0 %1413
        %v1415 = vld [vmem:[#allocation7 + $0x15] sm:$0x1]
        %v1416 = vlaneseq
        %v1417 = vshrl.u32 %v1416, 7
        %v1418 = vsub.s32 0, %v1417
        %v1419 = vrot.slane %v1415, %v1418
        %v1420 = vmul.f32 %v1419, %v1412
        %v1421 = vmul.f32 %v1419, %v1414
        %v1422 = vadd.f32 %v1409, %v1420
        %v1423 = vadd.f32 %v1410, %v1421
        %v1424 = vld [vmem:[#allocation7 + $0x16] sm:$0x1]
        %v1425 = vlaneseq
        %v1426 = vshrl.u32 %v1425, 7
        %v1427 = vsub.s32 0, %v1426
        %v1428 = vrot.slane %v1424, %v1427
        %v1429 = vmul.f32 %v1428, %v1362
        %v1430 = vmul.f32 %v1428, %v1363
        %v1431 = vadd.f32 %v1422, %v1429
        %v1432 = vadd.f32 %v1423, %v1430
        %1433 = vrot.lane.b32.xlu0 %v1362, 127
        %v1434 = vpop.permute.xlu0 %1433
        %1435 = vrot.lane.b32.xlu0 %v1363, 127
        %v1436 = vpop.permute.xlu0 %1435
        %v1437 = vld [vmem:[#allocation7 + $0x17] sm:$0x1]
        %v1438 = vlaneseq
        %v1439 = vshrl.u32 %v1438, 7
        %v1440 = vsub.s32 0, %v1439
        %v1441 = vrot.slane %v1437, %v1440
        %v1442 = vmul.f32 %v1441, %v1434
        %v1443 = vmul.f32 %v1441, %v1436
        %v1444 = vadd.f32 %v1431, %v1442
        %v1445 = vadd.f32 %v1432, %v1443
        %1446 = vrot.lane.b32.xlu0 %v1374, 1
        %v1447 = vpop.permute.xlu0 %1446
        %1448 = vrot.lane.b32.xlu0 %v1375, 1
        %v1449 = vpop.permute.xlu0 %1448
        %v1450 = vld [vmem:[#allocation7 + $0x18] sm:$0x1]
        %v1451 = vlaneseq
        %v1452 = vshrl.u32 %v1451, 7
        %v1453 = vsub.s32 0, %v1452
        %v1454 = vrot.slane %v1450, %v1453
        %v1455 = vmul.f32 %v1454, %v1447
        %v1456 = vmul.f32 %v1454, %v1449
        %v1457 = vadd.f32 %v1444, %v1455
        %v1458 = vadd.f32 %v1445, %v1456
        %v1459 = vld [vmem:[#allocation7 + $0x19] sm:$0x1]
        %v1460 = vlaneseq
        %v1461 = vshrl.u32 %v1460, 7
        %v1462 = vsub.s32 0, %v1461
        %v1463 = vrot.slane %v1459, %v1462
        %v1464 = vmul.f32 %v1463, %v1374
        %v1465 = vmul.f32 %v1463, %v1375
        %v1466 = vadd.f32 %v1457, %v1464
        %v1467 = vadd.f32 %v1458, %v1465
        %1468 = vrot.lane.b32.xlu0 %v1374, 127
        %v1469 = vpop.permute.xlu0 %1468
        %1470 = vrot.lane.b32.xlu0 %v1375, 127
        %v1471 = vpop.permute.xlu0 %1470
        %v1472 = vld [vmem:[#allocation7 + $0x1a] sm:$0x1]
        %v1473 = vlaneseq
        %v1474 = vshrl.u32 %v1473, 7
        %v1475 = vsub.s32 0, %v1474
        %v1476 = vrot.slane %v1472, %v1475
        %v1477 = vmul.f32 %v1476, %v1469
        %v1478 = vmul.f32 %v1476, %v1471
        %v1479 = vadd.f32 %v1466, %v1477
        %v1480 = vadd.f32 %v1467, %v1478
        %v1481 = vsel %vm255, %v1067, %v1073
        %v1482 = vsel %vm255, %v1069, %v1075
        %v1483 = vsel %vm258, %v1481, %v1079
        %v1484 = vsel %vm258, %v1482, %v1081
        %v1485 = vsel %vm261, %v1483, %v1038
        %v1486 = vsel %vm261, %v1484, %v1039
        %v1487 = vsel %vm1090, %v1485, %v1043
        %v1488 = vsel %vm1090, %v1486, %v1045
        %v1489 = vsel %vm1093, %v1487, %v1049
        %v1490 = vsel %vm1093, %v1488, %v1051
        %v1491 = vsel %vm1096, %v1489, %v1055
        %v1492 = vsel %vm1096, %v1490, %v1057
        %v1493 = vsel %vm1099, %v1491, %v1061
        %v1494 = vsel %vm1099, %v1492, %v1063
        %v1495 = vrot.slane %v1493, 7
        %v1496 = vrot.slane %v1494, 7
        %v1497 = vsel %vm266, %v1495, %v1496
        %v1498 = vsel %vm266, %v1496, %v1495
        %v1499 = vmul.f32 %v1498, %v225
        %v1500 = vmul.f32 %v1497, %v226
        %v1501 = vrot.slane %v1493, 1
        %v1502 = vrot.slane %v1494, 1
        %v1503 = vsel %vm273, %v1501, %v1502
        %v1504 = vsel %vm273, %v1502, %v1501
        %v1505 = vmul.f32 %v1503, %v231
        %v1506 = vmul.f32 %v1504, %v232
        %1507 = vrot.lane.b32.xlu0 %v1499, 1
        %v1508 = vpop.permute.xlu0 %1507
        %1509 = vrot.lane.b32.xlu0 %v1500, 1
        %v1510 = vpop.permute.xlu0 %1509
        %v1511 = vld [vmem:[#allocation7 + $0x1b] sm:$0x1]
        %v1512 = vlaneseq
        %v1513 = vshrl.u32 %v1512, 7
        %v1514 = vsub.s32 0, %v1513
        %v1515 = vrot.slane %v1511, %v1514
        %v1516 = vmul.f32 %v1515, %v1508
        %v1517 = vmul.f32 %v1515, %v1510
        %v1518 = vadd.f32 %v1479, %v1516
        %v1519 = vadd.f32 %v1480, %v1517
        %v1520 = vld [vmem:[#allocation7 + $0x1c] sm:$0x1]
        %v1521 = vlaneseq
        %v1522 = vshrl.u32 %v1521, 7
        %v1523 = vsub.s32 0, %v1522
        %v1524 = vrot.slane %v1520, %v1523
        %v1525 = vmul.f32 %v1524, %v1499
        %v1526 = vmul.f32 %v1524, %v1500
        %v1527 = vadd.f32 %v1518, %v1525
        %v1528 = vadd.f32 %v1519, %v1526
        %1529 = vrot.lane.b32.xlu0 %v1499, 127
        %v1530 = vpop.permute.xlu0 %1529
        %1531 = vrot.lane.b32.xlu0 %v1500, 127
        %v1532 = vpop.permute.xlu0 %1531
        %v1533 = vld [vmem:[#allocation7 + $0x1d] sm:$0x1]
        %v1534 = vlaneseq
        %v1535 = vshrl.u32 %v1534, 7
        %v1536 = vsub.s32 0, %v1535
        %v1537 = vrot.slane %v1533, %v1536
        %v1538 = vmul.f32 %v1537, %v1530
        %v1539 = vmul.f32 %v1537, %v1532
        %v1540 = vadd.f32 %v1527, %v1538
        %v1541 = vadd.f32 %v1528, %v1539
        %1542 = vrot.lane.b32.xlu0 %v1493, 1
        %v1543 = vpop.permute.xlu0 %1542
        %1544 = vrot.lane.b32.xlu0 %v1494, 1
        %v1545 = vpop.permute.xlu0 %1544
        %v1546 = vld [vmem:[#allocation7 + $0x1e] sm:$0x1]
        %v1547 = vlaneseq
        %v1548 = vshrl.u32 %v1547, 7
        %v1549 = vsub.s32 0, %v1548
        %v1550 = vrot.slane %v1546, %v1549
        %v1551 = vmul.f32 %v1550, %v1543
        %v1552 = vmul.f32 %v1550, %v1545
        %v1553 = vadd.f32 %v1540, %v1551
        %v1554 = vadd.f32 %v1541, %v1552
        %v1555 = vld [vmem:[#allocation7 + $0x1f] sm:$0x1]
        %v1556 = vlaneseq
        %v1557 = vshrl.u32 %v1556, 7
        %v1558 = vsub.s32 0, %v1557
        %v1559 = vrot.slane %v1555, %v1558
        %v1560 = vmul.f32 %v1559, %v1493
        %v1561 = vmul.f32 %v1559, %v1494
        %v1562 = vadd.f32 %v1553, %v1560
        %v1563 = vadd.f32 %v1554, %v1561
        %1564 = vrot.lane.b32.xlu0 %v1493, 127
        %v1565 = vpop.permute.xlu0 %1564
        %1566 = vrot.lane.b32.xlu0 %v1494, 127
        %v1567 = vpop.permute.xlu0 %1566
        %v1568 = vld [vmem:[#allocation7 + $0x20] sm:$0x1]
        %v1569 = vlaneseq
        %v1570 = vshrl.u32 %v1569, 7
        %v1571 = vsub.s32 0, %v1570
        %v1572 = vrot.slane %v1568, %v1571
        %v1573 = vmul.f32 %v1572, %v1565
        %v1574 = vmul.f32 %v1572, %v1567
        %v1575 = vadd.f32 %v1562, %v1573
        %v1576 = vadd.f32 %v1563, %v1574
        %1577 = vrot.lane.b32.xlu0 %v1505, 1
        %v1578 = vpop.permute.xlu0 %1577
        %1579 = vrot.lane.b32.xlu0 %v1506, 1
        %v1580 = vpop.permute.xlu0 %1579
        %v1581 = vld [vmem:[#allocation7 + $0x21] sm:$0x1]
        %v1582 = vlaneseq
        %v1583 = vshrl.u32 %v1582, 7
        %v1584 = vsub.s32 0, %v1583
        %v1585 = vrot.slane %v1581, %v1584
        %v1586 = vmul.f32 %v1585, %v1578
        %v1587 = vmul.f32 %v1585, %v1580
        %v1588 = vadd.f32 %v1575, %v1586
        %v1589 = vadd.f32 %v1576, %v1587
        %v1590 = vld [vmem:[#allocation7 + $0x22] sm:$0x1]
        %v1591 = vlaneseq
        %v1592 = vshrl.u32 %v1591, 7
        %v1593 = vsub.s32 0, %v1592
        %v1594 = vrot.slane %v1590, %v1593
        %v1595 = vmul.f32 %v1594, %v1505
        %v1596 = vmul.f32 %v1594, %v1506
        %v1597 = vadd.f32 %v1588, %v1595
        %v1598 = vadd.f32 %v1589, %v1596
        %1599 = vrot.lane.b32.xlu0 %v1505, 127
        %v1600 = vpop.permute.xlu0 %1599
        %1601 = vrot.lane.b32.xlu0 %v1506, 127
        %v1602 = vpop.permute.xlu0 %1601
        %v1603 = vld [vmem:[#allocation7 + $0x23] sm:$0x1]
        %v1604 = vlaneseq
        %v1605 = vshrl.u32 %v1604, 7
        %v1606 = vsub.s32 0, %v1605
        %v1607 = vrot.slane %v1603, %v1606
        %v1608 = vmul.f32 %v1607, %v1600
        %v1609 = vmul.f32 %v1607, %v1602
        %v1610 = vadd.f32 %v1597, %v1608
        %v1611 = vadd.f32 %v1598, %v1609
        %1612 = vst [vmem:[%s217] sm:$0xff] %v1610
        %1613 = vst [vmem:[%s217 + $0x8] sm:$0xff] %v1611
        %s1614 = sand.u32 %s97, 1
        %s1615 = scalar_lea.sflag [#allocation4], %s1614
        %s1616 = sand.u32 %s97, 1
        %s1617 = smul.addr %s1616, 16
        %s1618 = scalar_lea.vmem [#allocation8], %s1617
        // Predicated region
        $region45: #{tpu_custom_call.1} parent=31 // pred_check
          %p1619 = pneg %p107
        $region46: #{tpu_custom_call.1} parent=31 // pred_check_branch
          %1621 = sbr.rel (%p1619) target = $region48
        $region47: #{tpu_custom_call.1} parent=31 // pred_region
          %s1623 = ssub.s32 256, 256
          %1624 = vsyncadd %s1615, %s1623
          %s1625 = smul.addr %s21, 2
          %s1626 = smul.addr %s1625, 128
          %s1627 = scalar_lea.hbm %s3, %s1626
          %s1628 = sshll.u32 %s1618, 4
          %s1629 = int_to_ptr.vmem [resolvable:$true] %s1628
          %1634 = dma.vmem_to_hbm [thread:$0]  %s1629, 256, %s1627, %s1615, 128, 128, 8
        $region48: #{tpu_custom_call.1} parent=31 // pred_fallthru
          _
      $region32: #{tpu_custom_call.1} parent=5 // pred_fallthru
        _
      %p1635 = scmp.le.s32.totalorder 2, %s16
      // Predicated region
      $region49: #{tpu_custom_call.1} parent=5 // pred_check
        %p1636 = pneg %p1635
      $region50: #{tpu_custom_call.1} parent=5 // pred_check_branch
        %1638 = sbr.rel (%p1636) target = $region52
      $region51: #{tpu_custom_call.1} parent=5 // pred_region
        %s1639 = ssub.s32 %s16, 2
        // Predicated region
        $region53: #{tpu_custom_call.1} parent=51 // pred_check
          %p1640 = pneg %p113
        $region54: #{tpu_custom_call.1} parent=51 // pred_check_branch
          %1642 = sbr.rel (%p1640) target = $region56
        $region55: #{tpu_custom_call.1} parent=51 // pred_region
          %s1643 = sand.u32 %s98, 1
          %s1644 = scalar_lea.sflag [#allocation4], %s1643
          %s1645 = sand.u32 %s98, 1
          %s1646 = smul.addr %s1645, 16
          %s1647 = scalar_lea.vmem [#allocation8], %s1646
          %1648 = dma.done %s1644, 256
        $region56: #{tpu_custom_call.1} parent=51 // pred_fallthru
          _
      $region52: #{tpu_custom_call.1} parent=5 // pred_fallthru
        _
    $region6: #{tpu_custom_call.1} parent=1 // loop_footer
      %s20 = sadd.s32 1, %s16
    $region7: #{tpu_custom_call.1} parent=1 // loop_footer_branch
      %15 = sbr.rel target = $region3
    $region8: #{tpu_custom_call.1} parent=1 // loop_exit
      _
    %1649 = vsyncpa [#allocation3], 1
    %s1650 = scalar_lea.sflag [#allocation3], 1
    %1651 = vsyncpa %s1650, 1
    %1652 = vsyncpa [#allocation6], 1
    %1653 = vsyncpa [#allocation4], 1
    %s1654 = scalar_lea.sflag [#allocation4], 1
    %1655 = vsyncpa %s1654, 1

</llo_original>
